<compile_context>
chip_gen: v7x
topology: tpu7x:2x2x1
jax: 0.10.0
libtpu: 0.0.40
codegen_flags: <defaults>
</compile_context>

<pallas_src>
import jax
import jax.numpy as jnp
from jax import lax
from jax.experimental import pallas as pl
from jax.experimental.pallas import tpu as pltpu


def _round_up(n, m):
    return ((n + m - 1) // m) * m


# --------------------------------------------------------------------------------------
# Kernel 1: batched input projection + serial LSTM recurrence (single grid step)
# --------------------------------------------------------------------------------------
def _lstm_kernel(x2d_ref, h0_ref, c0_ref, wih_ref, whh_ref, b_ref,
                 hs_ref, hn_ref, cn_ref, xp_sc):
    T, Bp, Hp = hs_ref.shape

    # (1) One big MXU-shaped matmul for the input projection of every timestep:
    #     (T*Bp, Ep) @ (Ep, 4*Hp) + bias  -> stored in VMEM scratch.
    xp_sc[...] = (jnp.dot(x2d_ref[...], wih_ref[...],
                          preferred_element_type=jnp.float32) + b_ref[...])

    whh = whh_ref[...]                                    # (Hp, 4*Hp), stays in vregs/VMEM

    def cell(row0, t_idx, h, c):
        gates = xp_sc[pl.ds(row0, Bp), :] + jnp.dot(
            h, whh, preferred_element_type=jnp.float32)   # (Bp, 4*Hp)
        # PyTorch gate order i, f, g, o.  Each gate occupies its own lane-aligned Hp-wide
        # block, so these slices never cut inside a 128-lane tile.
        i_g = jax.nn.sigmoid(gates[:, 0 * Hp:1 * Hp])
        f_g = jax.nn.sigmoid(gates[:, 1 * Hp:2 * Hp])
        g_g = jnp.tanh(gates[:, 2 * Hp:3 * Hp])
        o_g = jax.nn.sigmoid(gates[:, 3 * Hp:4 * Hp])
        c_new = f_g * c + i_g * g_g
        h_new = o_g * jnp.tanh(c_new)
        hs_ref[t_idx] = h_new
        return h_new, c_new

    h = h0_ref[...]
    c = c0_ref[...]
    if T <= 32:
        # Short static T: full trace-time unroll (LLO scheduler gets full visibility).
        for t in range(T):
            h, c = cell(t * Bp, t, h, c)
    else:
        # Long T: keep code size bounded.
        def body(t, hc):
            return cell(pl.multiple_of(t * Bp, 8), t, *hc)
        h, c = lax.fori_loop(0, T, body, (h, c))

    hn_ref[...] = h
    cn_ref[...] = c


# --------------------------------------------------------------------------------------
# Kernel 2: attention + out1 + out2, grid = (T parallel, V tiles arbitrary)
# --------------------------------------------------------------------------------------
def _attn_ffn_kernel(hs_ref, enc_ref, amask_ref,
                     w1a_ref, w1b_ref, b1_ref, w2_ref, b2_ref,
                     out_ref, o1_sc):
    v = pl.program_id(1)

    @pl.when(v == 0)
    def _():
        h_t = hs_ref[0]                                   # (Bp, Hp)
        enc = enc_ref[0]                                  # (Sp, Hp)
        # interact = h_t @ enc.T  (contract on H, no in-kernel transpose)
        interact = lax.dot_general(h_t, enc, (((1,), (1,)), ((), ())),
                                   preferred_element_type=jnp.float32)   # (Bp, Sp)
        # Additive mask precomputed in the wrapper; literal PyTorch semantics
        # interact + (mask - 1) * (-1e9); padded S positions carry -1e30.
        interact = interact + amask_ref[0]                # (1, Sp) broadcasts over Bp
        m = jnp.max(interact, axis=-1, keepdims=True)
        e = jnp.exp(interact - m)
        attn = e * pl.reciprocal(jnp.sum(e, axis=-1, keepdims=True), approx=True)
        context = jnp.dot(attn, enc, preferred_element_type=jnp.float32)  # (Bp, Hp)
        # out1 = Linear(tanh(cat([output, context], -1))); tanh is elementwise so the
        # concatenated matmul splits into two lane-dense matmuls.
        o1_sc[...] = (jnp.dot(jnp.tanh(h_t), w1a_ref[...],
                              preferred_element_type=jnp.float32)
                      + jnp.dot(jnp.tanh(context), w1b_ref[...],
                                preferred_element_type=jnp.float32)
                      + b1_ref[...])                      # (Bp, Hp)

    # out2 tile: (Bp, Hp) @ (Hp, tn) + bias   -- lane-dense output store.
    out_ref[0] = (jnp.dot(o1_sc[...], w2_ref[...], preferred_element_type=jnp.float32)
                  + b2_ref[...]).astype(out_ref.dtype)


# --------------------------------------------------------------------------------------
# Wrapper: padding / parameter plumbing + the two pallas_calls
# --------------------------------------------------------------------------------------
def decoder_forward(x, enc_out, enc_mask, h0, c0, params, *, v_block=512):
    f32 = jnp.float32
    T, B, E = x.shape
    _, S, H = enc_out.shape
    V = params["W2"].shape[0]

    # Lane/sublane-dense padded dims.
    Bp = _round_up(B, 8)
    Ep = _round_up(E, 128)
    Hp = _round_up(H, 128)
    Sp = _round_up(S, 128)
    tn = min(_round_up(v_block, 128), _round_up(V, 128))   # V tile (lane-dense)
    Vp = _round_up(V, tn)
    nv = Vp // tn

    # ---- LSTM weights: per-gate lane-aligned padded layout (E/H rows zero-padded). ----
    W_ih = params["W_ih"].astype(f32)                      # (4H, E)
    W_hh = params["W_hh"].astype(f32)                      # (4H, H)
    bias = (params["b_ih"] + params["b_hh"]).astype(f32)   # (4H,)
    wih_t = jnp.zeros((Ep, 4 * Hp), f32)
    whh_t = jnp.zeros((Hp, 4 * Hp), f32)
    b_row = jnp.zeros((1, 4 * Hp), f32)
    for g in range(4):
        wih_t = wih_t.at[:E, g * Hp:g * Hp + H].set(W_ih[g * H:(g + 1) * H, :].T)
        whh_t = whh_t.at[:H, g * Hp:g * Hp + H].set(W_hh[g * H:(g + 1) * H, :].T)
        b_row = b_row.at[0, g * Hp:g * Hp + H].set(bias[g * H:(g + 1) * H])

    def pad2(a, r, c):
        a = a.astype(f32)
        return jnp.pad(a, ((0, r - a.shape[0]), (0, c - a.shape[1])))

    w1a_t = pad2(params["W1"][:, :H].T, Hp, Hp)            # contracts with tanh(output)
    w1b_t = pad2(params["W1"][:, H:].T, Hp, Hp)            # contracts with tanh(context)
    b1 = jnp.zeros((1, Hp), f32).at[0, :H].set(params["b1"].astype(f32))
    w2_t = pad2(params["W2"].T, Hp, Vp)
    b2 = jnp.zeros((1, Vp), f32).at[0, :V].set(params["b2"].astype(f32))

    # ---- padded activations ----
    x2d = jnp.pad(x.astype(f32), ((0, 0), (0, Bp - B), (0, Ep - E))).reshape(T * Bp, Ep)
    h0_p = pad2(h0[0], Bp, Hp)
    c0_p = pad2(c0[0], Bp, Hp)
    enc_p = jnp.pad(enc_out.astype(f32), ((0, 0), (0, Sp - S), (0, Hp - H)))
    # Precomputed additive mask (literal module semantics); padded S gets -1e30.
    add_mask = (enc_mask.astype(f32) - 1.0) * (-1e9)
    add_mask = jnp.pad(add_mask, ((0, 0), (0, Sp - S)), constant_values=-1e30)
    add_mask = add_mask.reshape(T, 1, Sp)

    # ---- Kernel 1: LSTM recurrence (everything VMEM-resident, one grid step). ----
    # TODO(synk): for very large T / hidden sizes, tile the input projection and hidden-state
    # writeback over a T-chunk grid axis instead of holding the full (T*Bp, 4*Hp) projection.
    hs, h_n, c_n = pl.pallas_call(
        _lstm_kernel,
        out_shape=(jax.ShapeDtypeStruct((T, Bp, Hp), f32),
                   jax.ShapeDtypeStruct((Bp, Hp), f32),
                   jax.ShapeDtypeStruct((Bp, Hp), f32)),
        grid_spec=pltpu.PrefetchScalarGridSpec(
            num_scalar_prefetch=0,
            grid=(1,),
            in_specs=[
                pl.BlockSpec((T * Bp, Ep), lambda i: (0, 0)),    # x (flattened rows)
                pl.BlockSpec((Bp, Hp), lambda i: (0, 0)),        # h0
                pl.BlockSpec((Bp, Hp), lambda i: (0, 0)),        # c0
                pl.BlockSpec((Ep, 4 * Hp), lambda i: (0, 0)),    # W_ih^T (per-gate padded)
                pl.BlockSpec((Hp, 4 * Hp), lambda i: (0, 0)),    # W_hh^T (per-gate padded)
                pl.BlockSpec((1, 4 * Hp), lambda i: (0, 0)),     # b_ih + b_hh
            ],
            out_specs=[
                pl.BlockSpec((T, Bp, Hp), lambda i: (0, 0, 0)),  # all hidden states
                pl.BlockSpec((Bp, Hp), lambda i: (0, 0)),        # h_n
                pl.BlockSpec((Bp, Hp), lambda i: (0, 0)),        # c_n
            ],
            scratch_shapes=[pltpu.VMEM((T * Bp, 4 * Hp), f32)],  # batched input projection
        ),
        compiler_params=pltpu.CompilerParams(dimension_semantics=("arbitrary",)),
    )(x2d, h0_p, c0_p, wih_t, whh_t, b_row)

    # ---- Kernel 2: attention + out1 + out2 (T parallel, V tiled). ----
    out_p = pl.pallas_call(
        _attn_ffn_kernel,
        out_shape=jax.ShapeDtypeStruct((T, Bp, Vp), f32),
        grid_spec=pltpu.PrefetchScalarGridSpec(
            num_scalar_prefetch=0,
            grid=(T, nv),
            in_specs=[
                pl.BlockSpec((1, Bp, Hp), lambda t, v: (t, 0, 0)),   # LSTM output h_t
                pl.BlockSpec((1, Sp, Hp), lambda t, v: (t, 0, 0)),   # enc_out_t
                pl.BlockSpec((1, 1, Sp), lambda t, v: (t, 0, 0)),    # additive mask_t
                pl.BlockSpec((Hp, Hp), lambda t, v: (0, 0)),         # W1a^T
                pl.BlockSpec((Hp, Hp), lambda t, v: (0, 0)),         # W1b^T
                pl.BlockSpec((1, Hp), lambda t, v: (0, 0)),          # b1
                pl.BlockSpec((Hp, tn), lambda t, v: (0, v)),         # W2^T tile over V
                pl.BlockSpec((1, tn), lambda t, v: (0, v)),          # b2 tile
            ],
            out_specs=pl.BlockSpec((1, Bp, tn), lambda t, v: (t, 0, v)),
            scratch_shapes=[pltpu.VMEM((Bp, Hp), f32)],              # cached out1 per t
        ),
        compiler_params=pltpu.CompilerParams(
            dimension_semantics=("parallel", "arbitrary"),
            vmem_limit_bytes=64 * 1024 * 1024,
        ),
    )(hs, enc_p, add_mask, w1a_t, w1b_t, b1, w2_t, b2)

    out2 = out_p[:, :B, :V].astype(x.dtype)
    h_n_out = h_n[:B, :H][None].astype(x.dtype)
    c_n_out = c_n[:B, :H][None].astype(x.dtype)
    return out2, (h_n_out, c_n_out)


# ---------------- pure-JAX reference (mirrors the PyTorch forward) ----------------
def decoder_reference(x, enc_out, enc_mask, h0, c0, params):
    W_ih, W_hh = params["W_ih"], params["W_hh"]
    b_ih, b_hh = params["b_ih"], params["b_hh"]
    W1, b1, W2, b2 = params["W1"], params["b1"], params["W2"], params["b2"]
    H = W_hh.shape[1]

    def step(carry, x_t):
        h, c = carry
        gates = x_t @ W_ih.T + h @ W_hh.T + b_ih + b_hh
        i = jax.nn.sigmoid(gates[:, 0 * H:1 * H])
        f = jax.nn.sigmoid(gates[:, 1 * H:2 * H])
        g = jnp.tanh(gates[:, 2 * H:3 * H])
        o = jax.nn.sigmoid(gates[:, 3 * H:4 * H])
        c_new = f * c + i * g
        h_new = o * jnp.tanh(c_new)
        return (h_new, c_new), h_new

    (h_n, c_n), output = lax.scan(step, (h0[0], c0[0]), x)        # output: (T, B, H)
    interact = jnp.einsum("tbh,tsh->tbs", output, enc_out)
    interact = interact + (enc_mask[:, None, :] - 1.0) * (-1e9)
    attn = jax.nn.softmax(interact, axis=-1)
    context = jnp.einsum("tbs,tsh->tbh", attn, enc_out)
    cat = jnp.tanh(jnp.concatenate([output, context], axis=-1))
    o1 = cat @ W1.T + b1
    o2 = o1 @ W2.T + b2
    return o2, (h_n[None], c_n[None])


def init_params(key, hidden_size, input_size, vocab_size):
    H, E, V = hidden_size, input_size, vocab_size
    ks = jax.random.split(key, 8)
    k_lstm = 1.0 / jnp.sqrt(H)
    k1 = 1.0 / jnp.sqrt(2 * H)
    k2 = 1.0 / jnp.sqrt(H)
    u = lambda k, shp, s: jax.random.uniform(k, shp, jnp.float32, -s, s)
    return dict(
        W_ih=u(ks[0], (4 * H, E), k_lstm),
        W_hh=u(ks[1], (4 * H, H), k_lstm),
        b_ih=u(ks[2], (4 * H,), k_lstm),
        b_hh=u(ks[3], (4 * H,), k_lstm),
        W1=u(ks[4], (H, 2 * H), k1),
        b1=u(ks[5], (H,), k1),
        W2=u(ks[6], (V, H), k2),
        b2=u(ks[7], (V,), k2),
    )


if __name__ == "__main__":
    T, B, E, H, S, V = 8, 4, 16, 32, 16, 64

    key = jax.random.PRNGKey(0)
    kx, ke, kh, kc, kp = jax.random.split(key, 5)

    x = jax.random.normal(kx, (T, B, E), jnp.float32)
    enc_out = jax.random.normal(ke, (T, S, H), jnp.float32)
    enc_mask = jnp.ones((T, S), jnp.float32).at[::2, -1].set(0.0)
    h0 = 0.1 * jax.random.normal(kh, (1, B, H), jnp.float32)
    c0 = 0.1 * jax.random.normal(kc, (1, B, H), jnp.float32)
    params = init_params(kp, H, E, V)

    out2, (h_n, c_n) = decoder_forward(x, enc_out, enc_mask, h0, c0, params)
    jax.block_until_ready((out2, h_n, c_n))

    ref_out2, (ref_h, ref_c) = decoder_reference(x, enc_out, enc_mask, h0, c0, params)
    assert out2.shape == (T, B, V) and h_n.shape == (1, B, H) and c_n.shape == (1, B, H)
    assert jnp.allclose(out2, ref_out2, rtol=2e-2, atol=2e-2)
    assert jnp.allclose(h_n, ref_h, rtol=2e-2, atol=2e-2)
    assert jnp.allclose(c_n, ref_c, rtol=2e-2, atol=2e-2)

    print("KERNEL_OK")
</pallas_src>

<mosaic_0001>
module attributes {stable_mosaic.version = 11 : i64} {
  func.func @_lstm_kernel(%arg0: i32, %arg1: memref<64x128xf32, #tpu.memory_space<vmem>>, %arg2: memref<8x128xf32, #tpu.memory_space<vmem>>, %arg3: memref<8x128xf32, #tpu.memory_space<vmem>>, %arg4: memref<128x512xf32, #tpu.memory_space<vmem>>, %arg5: memref<128x512xf32, #tpu.memory_space<vmem>>, %arg6: memref<1x512xf32, #tpu.memory_space<vmem>>, %arg7: memref<8x8x128xf32, #tpu.memory_space<vmem>>, %arg8: memref<8x128xf32, #tpu.memory_space<vmem>>, %arg9: memref<8x128xf32, #tpu.memory_space<vmem>>, %arg10: memref<64x512xf32, #tpu.memory_space<vmem>>) attributes {dimension_semantics = [#tpu.dimension_semantics<arbitrary>], iteration_bounds = array<i64: 1>, scalar_prefetch = 0 : i64, scratch_operands = 1 : i64, tpu.core_type = #tpu.core_type<tc>, window_params = [{pipeline_mode = #tpu.pipeline_mode<synchronous>, transform_indices = @transform_0, window_bounds = array<i64: 64, 128>}, {pipeline_mode = #tpu.pipeline_mode<synchronous>, transform_indices = @transform_1, window_bounds = array<i64: 8, 128>}, {pipeline_mode = #tpu.pipeline_mode<synchronous>, transform_indices = @transform_2, window_bounds = array<i64: 8, 128>}, {pipeline_mode = #tpu.pipeline_mode<synchronous>, transform_indices = @transform_3, window_bounds = array<i64: 128, 512>}, {pipeline_mode = #tpu.pipeline_mode<synchronous>, transform_indices = @transform_4, window_bounds = array<i64: 128, 512>}, {pipeline_mode = #tpu.pipeline_mode<synchronous>, transform_indices = @transform_5, window_bounds = array<i64: 1, 512>}, {pipeline_mode = #tpu.pipeline_mode<synchronous>, transform_indices = @transform_6, window_bounds = array<i64: 8, 8, 128>}, {pipeline_mode = #tpu.pipeline_mode<synchronous>, transform_indices = @transform_7, window_bounds = array<i64: 8, 128>}, {pipeline_mode = #tpu.pipeline_mode<synchronous>, transform_indices = @transform_8, window_bounds = array<i64: 8, 128>}]} {
    %c0 = arith.constant 0 : index
    %c0_0 = arith.constant 0 : index
    %0 = vector.load %arg1[%c0, %c0_0] : memref<64x128xf32, #tpu.memory_space<vmem>>, vector<64x128xf32>
    %c0_1 = arith.constant 0 : index
    %c0_2 = arith.constant 0 : index
    %1 = vector.load %arg4[%c0_1, %c0_2] : memref<128x512xf32, #tpu.memory_space<vmem>>, vector<128x512xf32>
    %cst = arith.constant dense<0.000000e+00> : vector<64x512xf32>
    %2 = tpu.matmul %0, %1, %cst {dimension_numbers = #tpu.dot_dimension_numbers<[1], [0], [0], [1], [0, 0, 1, 1], [], []>} : vector<64x128xf32>, vector<128x512xf32>, vector<64x512xf32> -> vector<64x512xf32>
    %c0_3 = arith.constant 0 : index
    %c0_4 = arith.constant 0 : index
    %3 = vector.load %arg6[%c0_3, %c0_4] : memref<1x512xf32, #tpu.memory_space<vmem>>, vector<1x512xf32>
    %4 = vector.broadcast %3 : vector<1x512xf32> to vector<64x512xf32>
    %5 = arith.addf %2, %4 : vector<64x512xf32>
    %c0_5 = arith.constant 0 : index
    %c0_6 = arith.constant 0 : index
    %6 = vector.load %arg10[%c0_5, %c0_6] : memref<64x512xf32, #tpu.memory_space<vmem>>, vector<64x512xf32>
    tpu.vector_store %arg10[%c0_5, %c0_6], %5 {strides = array<i32>} : memref<64x512xf32, #tpu.memory_space<vmem>>, vector<64x512xf32>,
    %c0_7 = arith.constant 0 : index
    %c0_8 = arith.constant 0 : index
    %7 = vector.load %arg5[%c0_7, %c0_8] : memref<128x512xf32, #tpu.memory_space<vmem>>, vector<128x512xf32>
    %c0_9 = arith.constant 0 : index
    %c0_10 = arith.constant 0 : index
    %8 = vector.load %arg2[%c0_9, %c0_10] : memref<8x128xf32, #tpu.memory_space<vmem>>, vector<8x128xf32>
    %c0_11 = arith.constant 0 : index
    %c0_12 = arith.constant 0 : index
    %9 = vector.load %arg3[%c0_11, %c0_12] : memref<8x128xf32, #tpu.memory_space<vmem>>, vector<8x128xf32>
    %c0_13 = arith.constant 0 : index
    %c0_14 = arith.constant 0 : index
    %10 = vector.load %arg10[%c0_13, %c0_14] : memref<64x512xf32, #tpu.memory_space<vmem>>, vector<8x512xf32>
    %cst_15 = arith.constant dense<0.000000e+00> : vector<8x512xf32>
    %11 = tpu.matmul %8, %7, %cst_15 {dimension_numbers = #tpu.dot_dimension_numbers<[1], [0], [0], [1], [0, 0, 1, 1], [], []>} : vector<8x128xf32>, vector<128x512xf32>, vector<8x512xf32> -> vector<8x512xf32>
    %12 = arith.addf %10, %11 : vector<8x512xf32>
    %13 = vector.extract_strided_slice %12 {offsets = [0, 0], sizes = [8, 128], strides = [1, 1]} : vector<8x512xf32> to vector<8x128xf32>
    %14 = arith.negf %13 : vector<8x128xf32>
    %15 = math.exp %14 : vector<8x128xf32>
    %cst_16 = arith.constant 1.000000e+00 : f32
    %16 = vector.broadcast %cst_16 : f32 to vector<8x128xf32>
    %17 = arith.addf %16, %15 : vector<8x128xf32>
    %18 = arith.divf %16, %17 : vector<8x128xf32>
    %19 = vector.extract_strided_slice %12 {offsets = [0, 128], sizes = [8, 128], strides = [1, 1]} : vector<8x512xf32> to vector<8x128xf32>
    %20 = arith.negf %19 : vector<8x128xf32>
    %21 = math.exp %20 : vector<8x128xf32>
    %cst_17 = arith.constant 1.000000e+00 : f32
    %22 = vector.broadcast %cst_17 : f32 to vector<8x128xf32>
    %23 = arith.addf %22, %21 : vector<8x128xf32>
    %24 = arith.divf %22, %23 : vector<8x128xf32>
    %25 = vector.extract_strided_slice %12 {offsets = [0, 256], sizes = [8, 128], strides = [1, 1]} : vector<8x512xf32> to vector<8x128xf32>
    %26 = math.tanh %25 : vector<8x128xf32>
    %27 = vector.extract_strided_slice %12 {offsets = [0, 384], sizes = [8, 128], strides = [1, 1]} : vector<8x512xf32> to vector<8x128xf32>
    %28 = arith.negf %27 : vector<8x128xf32>
    %29 = math.exp %28 : vector<8x128xf32>
    %cst_18 = arith.constant 1.000000e+00 : f32
    %30 = vector.broadcast %cst_18 : f32 to vector<8x128xf32>
    %31 = arith.addf %30, %29 : vector<8x128xf32>
    %32 = arith.divf %30, %31 : vector<8x128xf32>
    %33 = arith.mulf %24, %9 : vector<8x128xf32>
    %34 = arith.mulf %18, %26 : vector<8x128xf32>
    %35 = arith.addf %33, %34 : vector<8x128xf32>
    %36 = math.tanh %35 : vector<8x128xf32>
    %37 = arith.mulf %32, %36 : vector<8x128xf32>
    %c0_19 = arith.constant 0 : index
    %c0_20 = arith.constant 0 : index
    %c0_21 = arith.constant 0 : index
    %38 = vector.load %arg7[%c0_19, %c0_20, %c0_21] : memref<8x8x128xf32, #tpu.memory_space<vmem>>, vector<1x8x128xf32>
    %39 = vector.shape_cast %38 : vector<1x8x128xf32> to vector<8x128xf32>
    %40 = vector.shape_cast %37 : vector<8x128xf32> to vector<1x8x128xf32>
    tpu.vector_store %arg7[%c0_19, %c0_20, %c0_21], %40 {strides = array<i32>} : memref<8x8x128xf32, #tpu.memory_space<vmem>>, vector<1x8x128xf32>,
    %c8 = arith.constant 8 : index
    %c0_22 = arith.constant 0 : index
    %41 = vector.load %arg10[%c8, %c0_22] : memref<64x512xf32, #tpu.memory_space<vmem>>, vector<8x512xf32>
    %cst_23 = arith.constant dense<0.000000e+00> : vector<8x512xf32>
    %42 = tpu.matmul %37, %7, %cst_23 {dimension_numbers = #tpu.dot_dimension_numbers<[1], [0], [0], [1], [0, 0, 1, 1], [], []>} : vector<8x128xf32>, vector<128x512xf32>, vector<8x512xf32> -> vector<8x512xf32>
    %43 = arith.addf %41, %42 : vector<8x512xf32>
    %44 = vector.extract_strided_slice %43 {offsets = [0, 0], sizes = [8, 128], strides = [1, 1]} : vector<8x512xf32> to vector<8x128xf32>
    %45 = arith.negf %44 : vector<8x128xf32>
    %46 = math.exp %45 : vector<8x128xf32>
    %cst_24 = arith.constant 1.000000e+00 : f32
    %47 = vector.broadcast %cst_24 : f32 to vector<8x128xf32>
    %48 = arith.addf %47, %46 : vector<8x128xf32>
    %49 = arith.divf %47, %48 : vector<8x128xf32>
    %50 = vector.extract_strided_slice %43 {offsets = [0, 128], sizes = [8, 128], strides = [1, 1]} : vector<8x512xf32> to vector<8x128xf32>
    %51 = arith.negf %50 : vector<8x128xf32>
    %52 = math.exp %51 : vector<8x128xf32>
    %cst_25 = arith.constant 1.000000e+00 : f32
    %53 = vector.broadcast %cst_25 : f32 to vector<8x128xf32>
    %54 = arith.addf %53, %52 : vector<8x128xf32>
    %55 = arith.divf %53, %54 : vector<8x128xf32>
    %56 = vector.extract_strided_slice %43 {offsets = [0, 256], sizes = [8, 128], strides = [1, 1]} : vector<8x512xf32> to vector<8x128xf32>
    %57 = math.tanh %56 : vector<8x128xf32>
    %58 = vector.extract_strided_slice %43 {offsets = [0, 384], sizes = [8, 128], strides = [1, 1]} : vector<8x512xf32> to vector<8x128xf32>
    %59 = arith.negf %58 : vector<8x128xf32>
    %60 = math.exp %59 : vector<8x128xf32>
    %cst_26 = arith.constant 1.000000e+00 : f32
    %61 = vector.broadcast %cst_26 : f32 to vector<8x128xf32>
    %62 = arith.addf %61, %60 : vector<8x128xf32>
    %63 = arith.divf %61, %62 : vector<8x128xf32>
    %64 = arith.mulf %55, %35 : vector<8x128xf32>
    %65 = arith.mulf %49, %57 : vector<8x128xf32>
    %66 = arith.addf %64, %65 : vector<8x128xf32>
    %67 = math.tanh %66 : vector<8x128xf32>
    %68 = arith.mulf %63, %67 : vector<8x128xf32>
    %c1 = arith.constant 1 : index
    %c0_27 = arith.constant 0 : index
    %c0_28 = arith.constant 0 : index
    %69 = vector.load %arg7[%c1, %c0_27, %c0_28] : memref<8x8x128xf32, #tpu.memory_space<vmem>>, vector<1x8x128xf32>
    %70 = vector.shape_cast %69 : vector<1x8x128xf32> to vector<8x128xf32>
    %71 = vector.shape_cast %68 : vector<8x128xf32> to vector<1x8x128xf32>
    tpu.vector_store %arg7[%c1, %c0_27, %c0_28], %71 {strides = array<i32>} : memref<8x8x128xf32, #tpu.memory_space<vmem>>, vector<1x8x128xf32>,
    %c16 = arith.constant 16 : index
    %c0_29 = arith.constant 0 : index
    %72 = vector.load %arg10[%c16, %c0_29] : memref<64x512xf32, #tpu.memory_space<vmem>>, vector<8x512xf32>
    %cst_30 = arith.constant dense<0.000000e+00> : vector<8x512xf32>
    %73 = tpu.matmul %68, %7, %cst_30 {dimension_numbers = #tpu.dot_dimension_numbers<[1], [0], [0], [1], [0, 0, 1, 1], [], []>} : vector<8x128xf32>, vector<128x512xf32>, vector<8x512xf32> -> vector<8x512xf32>
    %74 = arith.addf %72, %73 : vector<8x512xf32>
    %75 = vector.extract_strided_slice %74 {offsets = [0, 0], sizes = [8, 128], strides = [1, 1]} : vector<8x512xf32> to vector<8x128xf32>
    %76 = arith.negf %75 : vector<8x128xf32>
    %77 = math.exp %76 : vector<8x128xf32>
    %cst_31 = arith.constant 1.000000e+00 : f32
    %78 = vector.broadcast %cst_31 : f32 to vector<8x128xf32>
    %79 = arith.addf %78, %77 : vector<8x128xf32>
    %80 = arith.divf %78, %79 : vector<8x128xf32>
    %81 = vector.extract_strided_slice %74 {offsets = [0, 128], sizes = [8, 128], strides = [1, 1]} : vector<8x512xf32> to vector<8x128xf32>
    %82 = arith.negf %81 : vector<8x128xf32>
    %83 = math.exp %82 : vector<8x128xf32>
    %cst_32 = arith.constant 1.000000e+00 : f32
    %84 = vector.broadcast %cst_32 : f32 to vector<8x128xf32>
    %85 = arith.addf %84, %83 : vector<8x128xf32>
    %86 = arith.divf %84, %85 : vector<8x128xf32>
    %87 = vector.extract_strided_slice %74 {offsets = [0, 256], sizes = [8, 128], strides = [1, 1]} : vector<8x512xf32> to vector<8x128xf32>
    %88 = math.tanh %87 : vector<8x128xf32>
    %89 = vector.extract_strided_slice %74 {offsets = [0, 384], sizes = [8, 128], strides = [1, 1]} : vector<8x512xf32> to vector<8x128xf32>
    %90 = arith.negf %89 : vector<8x128xf32>
    %91 = math.exp %90 : vector<8x128xf32>
    %cst_33 = arith.constant 1.000000e+00 : f32
    %92 = vector.broadcast %cst_33 : f32 to vector<8x128xf32>
    %93 = arith.addf %92, %91 : vector<8x128xf32>
    %94 = arith.divf %92, %93 : vector<8x128xf32>
    %95 = arith.mulf %86, %66 : vector<8x128xf32>
    %96 = arith.mulf %80, %88 : vector<8x128xf32>
    %97 = arith.addf %95, %96 : vector<8x128xf32>
    %98 = math.tanh %97 : vector<8x128xf32>
    %99 = arith.mulf %94, %98 : vector<8x128xf32>
    %c2 = arith.constant 2 : index
    %c0_34 = arith.constant 0 : index
    %c0_35 = arith.constant 0 : index
    %100 = vector.load %arg7[%c2, %c0_34, %c0_35] : memref<8x8x128xf32, #tpu.memory_space<vmem>>, vector<1x8x128xf32>
    %101 = vector.shape_cast %100 : vector<1x8x128xf32> to vector<8x128xf32>
    %102 = vector.shape_cast %99 : vector<8x128xf32> to vector<1x8x128xf32>
    tpu.vector_store %arg7[%c2, %c0_34, %c0_35], %102 {strides = array<i32>} : memref<8x8x128xf32, #tpu.memory_space<vmem>>, vector<1x8x128xf32>,
    %c24 = arith.constant 24 : index
    %c0_36 = arith.constant 0 : index
    %103 = vector.load %arg10[%c24, %c0_36] : memref<64x512xf32, #tpu.memory_space<vmem>>, vector<8x512xf32>
    %cst_37 = arith.constant dense<0.000000e+00> : vector<8x512xf32>
    %104 = tpu.matmul %99, %7, %cst_37 {dimension_numbers = #tpu.dot_dimension_numbers<[1], [0], [0], [1], [0, 0, 1, 1], [], []>} : vector<8x128xf32>, vector<128x512xf32>, vector<8x512xf32> -> vector<8x512xf32>
    %105 = arith.addf %103, %104 : vector<8x512xf32>
    %106 = vector.extract_strided_slice %105 {offsets = [0, 0], sizes = [8, 128], strides = [1, 1]} : vector<8x512xf32> to vector<8x128xf32>
    %107 = arith.negf %106 : vector<8x128xf32>
    %108 = math.exp %107 : vector<8x128xf32>
    %cst_38 = arith.constant 1.000000e+00 : f32
    %109 = vector.broadcast %cst_38 : f32 to vector<8x128xf32>
    %110 = arith.addf %109, %108 : vector<8x128xf32>
    %111 = arith.divf %109, %110 : vector<8x128xf32>
    %112 = vector.extract_strided_slice %105 {offsets = [0, 128], sizes = [8, 128], strides = [1, 1]} : vector<8x512xf32> to vector<8x128xf32>
    %113 = arith.negf %112 : vector<8x128xf32>
    %114 = math.exp %113 : vector<8x128xf32>
    %cst_39 = arith.constant 1.000000e+00 : f32
    %115 = vector.broadcast %cst_39 : f32 to vector<8x128xf32>
    %116 = arith.addf %115, %114 : vector<8x128xf32>
    %117 = arith.divf %115, %116 : vector<8x128xf32>
    %118 = vector.extract_strided_slice %105 {offsets = [0, 256], sizes = [8, 128], strides = [1, 1]} : vector<8x512xf32> to vector<8x128xf32>
    %119 = math.tanh %118 : vector<8x128xf32>
    %120 = vector.extract_strided_slice %105 {offsets = [0, 384], sizes = [8, 128], strides = [1, 1]} : vector<8x512xf32> to vector<8x128xf32>
    %121 = arith.negf %120 : vector<8x128xf32>
    %122 = math.exp %121 : vector<8x128xf32>
    %cst_40 = arith.constant 1.000000e+00 : f32
    %123 = vector.broadcast %cst_40 : f32 to vector<8x128xf32>
    %124 = arith.addf %123, %122 : vector<8x128xf32>
    %125 = arith.divf %123, %124 : vector<8x128xf32>
    %126 = arith.mulf %117, %97 : vector<8x128xf32>
    %127 = arith.mulf %111, %119 : vector<8x128xf32>
    %128 = arith.addf %126, %127 : vector<8x128xf32>
    %129 = math.tanh %128 : vector<8x128xf32>
    %130 = arith.mulf %125, %129 : vector<8x128xf32>
    %c3 = arith.constant 3 : index
    %c0_41 = arith.constant 0 : index
    %c0_42 = arith.constant 0 : index
    %131 = vector.load %arg7[%c3, %c0_41, %c0_42] : memref<8x8x128xf32, #tpu.memory_space<vmem>>, vector<1x8x128xf32>
    %132 = vector.shape_cast %131 : vector<1x8x128xf32> to vector<8x128xf32>
    %133 = vector.shape_cast %130 : vector<8x128xf32> to vector<1x8x128xf32>
    tpu.vector_store %arg7[%c3, %c0_41, %c0_42], %133 {strides = array<i32>} : memref<8x8x128xf32, #tpu.memory_space<vmem>>, vector<1x8x128xf32>,
    %c32 = arith.constant 32 : index
    %c0_43 = arith.constant 0 : index
    %134 = vector.load %arg10[%c32, %c0_43] : memref<64x512xf32, #tpu.memory_space<vmem>>, vector<8x512xf32>
    %cst_44 = arith.constant dense<0.000000e+00> : vector<8x512xf32>
    %135 = tpu.matmul %130, %7, %cst_44 {dimension_numbers = #tpu.dot_dimension_numbers<[1], [0], [0], [1], [0, 0, 1, 1], [], []>} : vector<8x128xf32>, vector<128x512xf32>, vector<8x512xf32> -> vector<8x512xf32>
    %136 = arith.addf %134, %135 : vector<8x512xf32>
    %137 = vector.extract_strided_slice %136 {offsets = [0, 0], sizes = [8, 128], strides = [1, 1]} : vector<8x512xf32> to vector<8x128xf32>
    %138 = arith.negf %137 : vector<8x128xf32>
    %139 = math.exp %138 : vector<8x128xf32>
    %cst_45 = arith.constant 1.000000e+00 : f32
    %140 = vector.broadcast %cst_45 : f32 to vector<8x128xf32>
    %141 = arith.addf %140, %139 : vector<8x128xf32>
    %142 = arith.divf %140, %141 : vector<8x128xf32>
    %143 = vector.extract_strided_slice %136 {offsets = [0, 128], sizes = [8, 128], strides = [1, 1]} : vector<8x512xf32> to vector<8x128xf32>
    %144 = arith.negf %143 : vector<8x128xf32>
    %145 = math.exp %144 : vector<8x128xf32>
    %cst_46 = arith.constant 1.000000e+00 : f32
    %146 = vector.broadcast %cst_46 : f32 to vector<8x128xf32>
    %147 = arith.addf %146, %145 : vector<8x128xf32>
    %148 = arith.divf %146, %147 : vector<8x128xf32>
    %149 = vector.extract_strided_slice %136 {offsets = [0, 256], sizes = [8, 128], strides = [1, 1]} : vector<8x512xf32> to vector<8x128xf32>
    %150 = math.tanh %149 : vector<8x128xf32>
    %151 = vector.extract_strided_slice %136 {offsets = [0, 384], sizes = [8, 128], strides = [1, 1]} : vector<8x512xf32> to vector<8x128xf32>
    %152 = arith.negf %151 : vector<8x128xf32>
    %153 = math.exp %152 : vector<8x128xf32>
    %cst_47 = arith.constant 1.000000e+00 : f32
    %154 = vector.broadcast %cst_47 : f32 to vector<8x128xf32>
    %155 = arith.addf %154, %153 : vector<8x128xf32>
    %156 = arith.divf %154, %155 : vector<8x128xf32>
    %157 = arith.mulf %148, %128 : vector<8x128xf32>
    %158 = arith.mulf %142, %150 : vector<8x128xf32>
    %159 = arith.addf %157, %158 : vector<8x128xf32>
    %160 = math.tanh %159 : vector<8x128xf32>
    %161 = arith.mulf %156, %160 : vector<8x128xf32>
    %c4 = arith.constant 4 : index
    %c0_48 = arith.constant 0 : index
    %c0_49 = arith.constant 0 : index
    %162 = vector.load %arg7[%c4, %c0_48, %c0_49] : memref<8x8x128xf32, #tpu.memory_space<vmem>>, vector<1x8x128xf32>
    %163 = vector.shape_cast %162 : vector<1x8x128xf32> to vector<8x128xf32>
    %164 = vector.shape_cast %161 : vector<8x128xf32> to vector<1x8x128xf32>
    tpu.vector_store %arg7[%c4, %c0_48, %c0_49], %164 {strides = array<i32>} : memref<8x8x128xf32, #tpu.memory_space<vmem>>, vector<1x8x128xf32>,
    %c40 = arith.constant 40 : index
    %c0_50 = arith.constant 0 : index
    %165 = vector.load %arg10[%c40, %c0_50] : memref<64x512xf32, #tpu.memory_space<vmem>>, vector<8x512xf32>
    %cst_51 = arith.constant dense<0.000000e+00> : vector<8x512xf32>
    %166 = tpu.matmul %161, %7, %cst_51 {dimension_numbers = #tpu.dot_dimension_numbers<[1], [0], [0], [1], [0, 0, 1, 1], [], []>} : vector<8x128xf32>, vector<128x512xf32>, vector<8x512xf32> -> vector<8x512xf32>
    %167 = arith.addf %165, %166 : vector<8x512xf32>
    %168 = vector.extract_strided_slice %167 {offsets = [0, 0], sizes = [8, 128], strides = [1, 1]} : vector<8x512xf32> to vector<8x128xf32>
    %169 = arith.negf %168 : vector<8x128xf32>
    %170 = math.exp %169 : vector<8x128xf32>
    %cst_52 = arith.constant 1.000000e+00 : f32
    %171 = vector.broadcast %cst_52 : f32 to vector<8x128xf32>
    %172 = arith.addf %171, %170 : vector<8x128xf32>
    %173 = arith.divf %171, %172 : vector<8x128xf32>
    %174 = vector.extract_strided_slice %167 {offsets = [0, 128], sizes = [8, 128], strides = [1, 1]} : vector<8x512xf32> to vector<8x128xf32>
    %175 = arith.negf %174 : vector<8x128xf32>
    %176 = math.exp %175 : vector<8x128xf32>
    %cst_53 = arith.constant 1.000000e+00 : f32
    %177 = vector.broadcast %cst_53 : f32 to vector<8x128xf32>
    %178 = arith.addf %177, %176 : vector<8x128xf32>
    %179 = arith.divf %177, %178 : vector<8x128xf32>
    %180 = vector.extract_strided_slice %167 {offsets = [0, 256], sizes = [8, 128], strides = [1, 1]} : vector<8x512xf32> to vector<8x128xf32>
    %181 = math.tanh %180 : vector<8x128xf32>
    %182 = vector.extract_strided_slice %167 {offsets = [0, 384], sizes = [8, 128], strides = [1, 1]} : vector<8x512xf32> to vector<8x128xf32>
    %183 = arith.negf %182 : vector<8x128xf32>
    %184 = math.exp %183 : vector<8x128xf32>
    %cst_54 = arith.constant 1.000000e+00 : f32
    %185 = vector.broadcast %cst_54 : f32 to vector<8x128xf32>
    %186 = arith.addf %185, %184 : vector<8x128xf32>
    %187 = arith.divf %185, %186 : vector<8x128xf32>
    %188 = arith.mulf %179, %159 : vector<8x128xf32>
    %189 = arith.mulf %173, %181 : vector<8x128xf32>
    %190 = arith.addf %188, %189 : vector<8x128xf32>
    %191 = math.tanh %190 : vector<8x128xf32>
    %192 = arith.mulf %187, %191 : vector<8x128xf32>
    %c5 = arith.constant 5 : index
    %c0_55 = arith.constant 0 : index
    %c0_56 = arith.constant 0 : index
    %193 = vector.load %arg7[%c5, %c0_55, %c0_56] : memref<8x8x128xf32, #tpu.memory_space<vmem>>, vector<1x8x128xf32>
    %194 = vector.shape_cast %193 : vector<1x8x128xf32> to vector<8x128xf32>
    %195 = vector.shape_cast %192 : vector<8x128xf32> to vector<1x8x128xf32>
    tpu.vector_store %arg7[%c5, %c0_55, %c0_56], %195 {strides = array<i32>} : memref<8x8x128xf32, #tpu.memory_space<vmem>>, vector<1x8x128xf32>,
    %c48 = arith.constant 48 : index
    %c0_57 = arith.constant 0 : index
    %196 = vector.load %arg10[%c48, %c0_57] : memref<64x512xf32, #tpu.memory_space<vmem>>, vector<8x512xf32>
    %cst_58 = arith.constant dense<0.000000e+00> : vector<8x512xf32>
    %197 = tpu.matmul %192, %7, %cst_58 {dimension_numbers = #tpu.dot_dimension_numbers<[1], [0], [0], [1], [0, 0, 1, 1], [], []>} : vector<8x128xf32>, vector<128x512xf32>, vector<8x512xf32> -> vector<8x512xf32>
    %198 = arith.addf %196, %197 : vector<8x512xf32>
    %199 = vector.extract_strided_slice %198 {offsets = [0, 0], sizes = [8, 128], strides = [1, 1]} : vector<8x512xf32> to vector<8x128xf32>
    %200 = arith.negf %199 : vector<8x128xf32>
    %201 = math.exp %200 : vector<8x128xf32>
    %cst_59 = arith.constant 1.000000e+00 : f32
    %202 = vector.broadcast %cst_59 : f32 to vector<8x128xf32>
    %203 = arith.addf %202, %201 : vector<8x128xf32>
    %204 = arith.divf %202, %203 : vector<8x128xf32>
    %205 = vector.extract_strided_slice %198 {offsets = [0, 128], sizes = [8, 128], strides = [1, 1]} : vector<8x512xf32> to vector<8x128xf32>
    %206 = arith.negf %205 : vector<8x128xf32>
    %207 = math.exp %206 : vector<8x128xf32>
    %cst_60 = arith.constant 1.000000e+00 : f32
    %208 = vector.broadcast %cst_60 : f32 to vector<8x128xf32>
    %209 = arith.addf %208, %207 : vector<8x128xf32>
    %210 = arith.divf %208, %209 : vector<8x128xf32>
    %211 = vector.extract_strided_slice %198 {offsets = [0, 256], sizes = [8, 128], strides = [1, 1]} : vector<8x512xf32> to vector<8x128xf32>
    %212 = math.tanh %211 : vector<8x128xf32>
    %213 = vector.extract_strided_slice %198 {offsets = [0, 384], sizes = [8, 128], strides = [1, 1]} : vector<8x512xf32> to vector<8x128xf32>
    %214 = arith.negf %213 : vector<8x128xf32>
    %215 = math.exp %214 : vector<8x128xf32>
    %cst_61 = arith.constant 1.000000e+00 : f32
    %216 = vector.broadcast %cst_61 : f32 to vector<8x128xf32>
    %217 = arith.addf %216, %215 : vector<8x128xf32>
    %218 = arith.divf %216, %217 : vector<8x128xf32>
    %219 = arith.mulf %210, %190 : vector<8x128xf32>
    %220 = arith.mulf %204, %212 : vector<8x128xf32>
    %221 = arith.addf %219, %220 : vector<8x128xf32>
    %222 = math.tanh %221 : vector<8x128xf32>
    %223 = arith.mulf %218, %222 : vector<8x128xf32>
    %c6 = arith.constant 6 : index
    %c0_62 = arith.constant 0 : index
    %c0_63 = arith.constant 0 : index
    %224 = vector.load %arg7[%c6, %c0_62, %c0_63] : memref<8x8x128xf32, #tpu.memory_space<vmem>>, vector<1x8x128xf32>
    %225 = vector.shape_cast %224 : vector<1x8x128xf32> to vector<8x128xf32>
    %226 = vector.shape_cast %223 : vector<8x128xf32> to vector<1x8x128xf32>
    tpu.vector_store %arg7[%c6, %c0_62, %c0_63], %226 {strides = array<i32>} : memref<8x8x128xf32, #tpu.memory_space<vmem>>, vector<1x8x128xf32>,
    %c56 = arith.constant 56 : index
    %c0_64 = arith.constant 0 : index
    %227 = vector.load %arg10[%c56, %c0_64] : memref<64x512xf32, #tpu.memory_space<vmem>>, vector<8x512xf32>
    %cst_65 = arith.constant dense<0.000000e+00> : vector<8x512xf32>
    %228 = tpu.matmul %223, %7, %cst_65 {dimension_numbers = #tpu.dot_dimension_numbers<[1], [0], [0], [1], [0, 0, 1, 1], [], []>} : vector<8x128xf32>, vector<128x512xf32>, vector<8x512xf32> -> vector<8x512xf32>
    %229 = arith.addf %227, %228 : vector<8x512xf32>
    %230 = vector.extract_strided_slice %229 {offsets = [0, 0], sizes = [8, 128], strides = [1, 1]} : vector<8x512xf32> to vector<8x128xf32>
    %231 = arith.negf %230 : vector<8x128xf32>
    %232 = math.exp %231 : vector<8x128xf32>
    %cst_66 = arith.constant 1.000000e+00 : f32
    %233 = vector.broadcast %cst_66 : f32 to vector<8x128xf32>
    %234 = arith.addf %233, %232 : vector<8x128xf32>
    %235 = arith.divf %233, %234 : vector<8x128xf32>
    %236 = vector.extract_strided_slice %229 {offsets = [0, 128], sizes = [8, 128], strides = [1, 1]} : vector<8x512xf32> to vector<8x128xf32>
    %237 = arith.negf %236 : vector<8x128xf32>
    %238 = math.exp %237 : vector<8x128xf32>
    %cst_67 = arith.constant 1.000000e+00 : f32
    %239 = vector.broadcast %cst_67 : f32 to vector<8x128xf32>
    %240 = arith.addf %239, %238 : vector<8x128xf32>
    %241 = arith.divf %239, %240 : vector<8x128xf32>
    %242 = vector.extract_strided_slice %229 {offsets = [0, 256], sizes = [8, 128], strides = [1, 1]} : vector<8x512xf32> to vector<8x128xf32>
    %243 = math.tanh %242 : vector<8x128xf32>
    %244 = vector.extract_strided_slice %229 {offsets = [0, 384], sizes = [8, 128], strides = [1, 1]} : vector<8x512xf32> to vector<8x128xf32>
    %245 = arith.negf %244 : vector<8x128xf32>
    %246 = math.exp %245 : vector<8x128xf32>
    %cst_68 = arith.constant 1.000000e+00 : f32
    %247 = vector.broadcast %cst_68 : f32 to vector<8x128xf32>
    %248 = arith.addf %247, %246 : vector<8x128xf32>
    %249 = arith.divf %247, %248 : vector<8x128xf32>
    %250 = arith.mulf %241, %221 : vector<8x128xf32>
    %251 = arith.mulf %235, %243 : vector<8x128xf32>
    %252 = arith.addf %250, %251 : vector<8x128xf32>
    %253 = math.tanh %252 : vector<8x128xf32>
    %254 = arith.mulf %249, %253 : vector<8x128xf32>
    %c7 = arith.constant 7 : index
    %c0_69 = arith.constant 0 : index
    %c0_70 = arith.constant 0 : index
    %255 = vector.load %arg7[%c7, %c0_69, %c0_70] : memref<8x8x128xf32, #tpu.memory_space<vmem>>, vector<1x8x128xf32>
    %256 = vector.shape_cast %255 : vector<1x8x128xf32> to vector<8x128xf32>
    %257 = vector.shape_cast %254 : vector<8x128xf32> to vector<1x8x128xf32>
    tpu.vector_store %arg7[%c7, %c0_69, %c0_70], %257 {strides = array<i32>} : memref<8x8x128xf32, #tpu.memory_space<vmem>>, vector<1x8x128xf32>,
    %c0_71 = arith.constant 0 : index
    %c0_72 = arith.constant 0 : index
    %258 = vector.load %arg8[%c0_71, %c0_72] : memref<8x128xf32, #tpu.memory_space<vmem>>, vector<8x128xf32>
    tpu.vector_store %arg8[%c0_71, %c0_72], %254 {strides = array<i32>} : memref<8x128xf32, #tpu.memory_space<vmem>>, vector<8x128xf32>,
    %c0_73 = arith.constant 0 : index
    %c0_74 = arith.constant 0 : index
    %259 = vector.load %arg9[%c0_73, %c0_74] : memref<8x128xf32, #tpu.memory_space<vmem>>, vector<8x128xf32>
    tpu.vector_store %arg9[%c0_73, %c0_74], %252 {strides = array<i32>} : memref<8x128xf32, #tpu.memory_space<vmem>>, vector<8x128xf32>,
    return
  }
  func.func @transform_0(%arg0: i32) -> (i32, i32) {
    %c0_i32 = arith.constant 0 : i32
    %c0_i32_0 = arith.constant 0 : i32
    %c0_i32_1 = arith.constant 0 : i32
    return %c0_i32, %c0_i32_0 : i32, i32
  }
  func.func @transform_1(%arg0: i32) -> (i32, i32) {
    %c0_i32 = arith.constant 0 : i32
    %c0_i32_0 = arith.constant 0 : i32
    %c0_i32_1 = arith.constant 0 : i32
    return %c0_i32, %c0_i32_0 : i32, i32
  }
  func.func @transform_2(%arg0: i32) -> (i32, i32) {
    %c0_i32 = arith.constant 0 : i32
    %c0_i32_0 = arith.constant 0 : i32
    %c0_i32_1 = arith.constant 0 : i32
    return %c0_i32, %c0_i32_0 : i32, i32
  }
  func.func @transform_3(%arg0: i32) -> (i32, i32) {
    %c0_i32 = arith.constant 0 : i32
    %c0_i32_0 = arith.constant 0 : i32
    %c0_i32_1 = arith.constant 0 : i32
    return %c0_i32, %c0_i32_0 : i32, i32
  }
  func.func @transform_4(%arg0: i32) -> (i32, i32) {
    %c0_i32 = arith.constant 0 : i32
    %c0_i32_0 = arith.constant 0 : i32
    %c0_i32_1 = arith.constant 0 : i32
    return %c0_i32, %c0_i32_0 : i32, i32
  }
  func.func @transform_5(%arg0: i32) -> (i32, i32) {
    %c0_i32 = arith.constant 0 : i32
    %c0_i32_0 = arith.constant 0 : i32
    %c0_i32_1 = arith.constant 0 : i32
    return %c0_i32, %c0_i32_0 : i32, i32
  }
  func.func @transform_6(%arg0: i32) -> (i32, i32, i32) {
    %c0_i32 = arith.constant 0 : i32
    %c0_i32_0 = arith.constant 0 : i32
    %c0_i32_1 = arith.constant 0 : i32
    %c0_i32_2 = arith.constant 0 : i32
    return %c0_i32, %c0_i32_0, %c0_i32_1 : i32, i32, i32
  }
  func.func @transform_7(%arg0: i32) -> (i32, i32) {
    %c0_i32 = arith.constant 0 : i32
    %c0_i32_0 = arith.constant 0 : i32
    %c0_i32_1 = arith.constant 0 : i32
    return %c0_i32, %c0_i32_0 : i32, i32
  }
  func.func @transform_8(%arg0: i32) -> (i32, i32) {
    %c0_i32 = arith.constant 0 : i32
    %c0_i32_0 = arith.constant 0 : i32
    %c0_i32_1 = arith.constant 0 : i32
    return %c0_i32, %c0_i32_0 : i32, i32
  }
}

</mosaic_0001>

<llo_original>
// kernel: tpu_custom_call.1
$region0: #{tpu_custom_call.1}
  #allocation0 [shape = 'u32[]', space=smem, size = 0x4, offset = 0x4, fixed_abs, tag = 'smem constant byte address 0x4 - core index']
  #allocation1 [shape = 'u32[144,128]{1,0:T(1,128)}', space=vmem, size = 0x12000, scoped, tag = 'internal scratch']
  #allocation2 [shape = 'f32[64,512]{1,0:T(8,128)}', space=vmem, size = 0x20000, scoped, tag = 'scratch operand']
  %s0 = inlined_call_operand.hbm [shape: f32[64,128], index: 0, kind: input, shape index: {}]
  %s1 = inlined_call_operand.hbm [shape: f32[8,128], index: 1, kind: input, shape index: {}]
  %s2 = inlined_call_operand.hbm [shape: f32[8,128], index: 2, kind: input, shape index: {}]
  %s3 = inlined_call_operand.hbm [shape: f32[128,512], index: 3, kind: input, shape index: {}]
  %s4 = inlined_call_operand.hbm [shape: f32[128,512], index: 4, kind: input, shape index: {}]
  %s5 = inlined_call_operand.vmem [shape: f32[1,512], index: 5, kind: input, shape index: {}]
  %s6 = inlined_call_operand.hbm [shape: f32[8,8,128], index: 6, kind: output, shape index: {0}]
  %s7 = inlined_call_operand.hbm [shape: f32[8,128], index: 7, kind: output, shape index: {1}]
  %s8 = inlined_call_operand.hbm [shape: f32[8,128], index: 8, kind: output, shape index: {2}]
  %9 = xla_tuple %s6, %s7, %s8
  %s10 = sld [smem:[#allocation0]]
  $region70: #{tpu_custom_call.1} parent=0
    _
  %s12 = ssub.s32 1, %s10
  %s13 = scalar_select 0, %s12, %s10
  $region1: #{tpu_custom_call.1} parent=0
    #allocation3 [shape = 'u8[32768]{0}', space=vmem, size = 0x8000, scoped, tag = 'input window, operand 0, single buffered']
    #allocation4 [shape = 's32[1]{0}', space=sflag, size = 0x4, scoped, tag = 'scoped memory for tpu_custom_call.1']
    #allocation5 [shape = 's32[1]{0}', space=sflag, size = 0x4, scoped, tag = 'scoped memory for tpu_custom_call.1']
    #allocation6 [shape = 'u8[4096]{0}', space=vmem, size = 0x1000, scoped, tag = 'input window, operand 1, single buffered']
    #allocation7 [shape = 's32[1]{0}', space=sflag, size = 0x4, scoped, tag = 'scoped memory for tpu_custom_call.1']
    #allocation8 [shape = 'u8[4096]{0}', space=vmem, size = 0x1000, scoped, tag = 'input window, operand 2, single buffered']
    #allocation9 [shape = 'u8[262144]{0}', space=vmem, size = 0x40000, scoped, tag = 'input window, operand 3, single buffered']
    #allocation10 [shape = 's32[1]{0}', space=sflag, size = 0x4, scoped, tag = 'scoped memory for tpu_custom_call.1']
    #allocation11 [shape = 'u8[262144]{0}', space=vmem, size = 0x40000, scoped, tag = 'input window, operand 4, single buffered']
    #allocation12 [shape = 'u8[32768]{0}', space=vmem, size = 0x8000, scoped, tag = 'output window, operand 0, single buffered']
    #allocation13 [shape = 'u8[4096]{0}', space=vmem, size = 0x1000, scoped, tag = 'output window, operand 1, single buffered']
    #allocation14 [shape = 's32[1]{0}', space=sflag, size = 0x4, scoped, tag = 'scoped memory for tpu_custom_call.1']
    #allocation15 [shape = 'u8[4096]{0}', space=vmem, size = 0x1000, scoped, tag = 'output window, operand 2, single buffered']
    %14 = vsyncpa [#allocation4], 0
    %15 = vsyncpa [#allocation7], 0
    %16 = vsyncpa [#allocation10], 0
    %17 = vsyncpa [#allocation5], 0
    %18 = vsyncpa [#allocation14], 0
    // Predicated region
    $region2: #{tpu_custom_call.1} parent=1 // pred_check
      _
    $region3: #{tpu_custom_call.1} parent=1 // pred_check_branch
      %20 = sbr.rel (0) target = $region5
    $region4: #{tpu_custom_call.1} parent=1 // pred_region
      %s22 = ssub.s32 1024, 1024
      %23 = vsyncadd [#allocation4], %s22
      %s24 = sshll.u32 [#allocation3], 4
      %s25 = int_to_ptr.vmem [resolvable:$true] %s24
      %30 = dma.hbm_to_vmem [thread:$0]  %s0, 1024, %s25, [#allocation4], 128, 128, 8
    $region5: #{tpu_custom_call.1} parent=1 // pred_fallthru
      _
    // Predicated region
    $region6: #{tpu_custom_call.1} parent=1 // pred_check
      _
    $region7: #{tpu_custom_call.1} parent=1 // pred_check_branch
      %32 = sbr.rel (0) target = $region9
    $region8: #{tpu_custom_call.1} parent=1 // pred_region
      %s34 = ssub.s32 128, 128
      %35 = vsyncadd [#allocation7], %s34
      %s37 = sshll.u32 [#allocation6], 4
      %s38 = int_to_ptr.vmem [resolvable:$true] %s37
      %40 = dma.hbm_to_vmem [thread:$0]  %s1, 128, %s38, [#allocation7]
    $region9: #{tpu_custom_call.1} parent=1 // pred_fallthru
      _
    // Predicated region
    $region10: #{tpu_custom_call.1} parent=1 // pred_check
      _
    $region11: #{tpu_custom_call.1} parent=1 // pred_check_branch
      %42 = sbr.rel (0) target = $region13
    $region12: #{tpu_custom_call.1} parent=1 // pred_region
      %s44 = ssub.s32 128, 128
      %45 = vsyncadd [#allocation7], %s44
      %s47 = sshll.u32 [#allocation8], 4
      %s48 = int_to_ptr.vmem [resolvable:$true] %s47
      %50 = dma.hbm_to_vmem [thread:$0]  %s2, 128, %s48, [#allocation7]
    $region13: #{tpu_custom_call.1} parent=1 // pred_fallthru
      _
    // Predicated region
    $region14: #{tpu_custom_call.1} parent=1 // pred_check
      _
    $region15: #{tpu_custom_call.1} parent=1 // pred_check_branch
      %52 = sbr.rel (0) target = $region17
    $region16: #{tpu_custom_call.1} parent=1 // pred_region
      %s54 = ssub.s32 8192, 8192
      %55 = vsyncadd [#allocation10], %s54
      %s56 = sshll.u32 [#allocation9], 4
      %s57 = int_to_ptr.vmem [resolvable:$true] %s56
      %62 = dma.hbm_to_vmem [thread:$0]  %s3, 8192, %s57, [#allocation10], 512, 512, 32
    $region17: #{tpu_custom_call.1} parent=1 // pred_fallthru
      _
    // Predicated region
    $region18: #{tpu_custom_call.1} parent=1 // pred_check
      _
    $region19: #{tpu_custom_call.1} parent=1 // pred_check_branch
      %64 = sbr.rel (0) target = $region21
    $region20: #{tpu_custom_call.1} parent=1 // pred_region
      %s66 = ssub.s32 8192, 8192
      %67 = vsyncadd [#allocation10], %s66
      %s68 = sshll.u32 [#allocation11], 4
      %s69 = int_to_ptr.vmem [resolvable:$true] %s68
      %74 = dma.hbm_to_vmem [thread:$0]  %s4, 8192, %s69, [#allocation10], 512, 512, 32
    $region21: #{tpu_custom_call.1} parent=1 // pred_fallthru
      _
    // Predicated region
    $region22: #{tpu_custom_call.1} parent=1 // pred_check
      _
    $region23: #{tpu_custom_call.1} parent=1 // pred_check_branch
      %76 = sbr.rel (0) target = $region25
    $region24: #{tpu_custom_call.1} parent=1 // pred_region
      _
    $region25: #{tpu_custom_call.1} parent=1 // pred_fallthru
      _
    // Predicated region
    $region26: #{tpu_custom_call.1} parent=1 // pred_check
      _
    $region27: #{tpu_custom_call.1} parent=1 // pred_check_branch
      %78 = sbr.rel (0) target = $region29
    $region28: #{tpu_custom_call.1} parent=1 // pred_region
      %79 = dma.done [#allocation4], 1024
    $region29: #{tpu_custom_call.1} parent=1 // pred_fallthru
      _
    // Predicated region
    $region30: #{tpu_custom_call.1} parent=1 // pred_check
      _
    $region31: #{tpu_custom_call.1} parent=1 // pred_check_branch
      %81 = sbr.rel (0) target = $region33
    $region32: #{tpu_custom_call.1} parent=1 // pred_region
      %82 = dma.done [#allocation7], 128
    $region33: #{tpu_custom_call.1} parent=1 // pred_fallthru
      _
    // Predicated region
    $region34: #{tpu_custom_call.1} parent=1 // pred_check
      _
    $region35: #{tpu_custom_call.1} parent=1 // pred_check_branch
      %84 = sbr.rel (0) target = $region37
    $region36: #{tpu_custom_call.1} parent=1 // pred_region
      %85 = dma.done [#allocation7], 128
    $region37: #{tpu_custom_call.1} parent=1 // pred_fallthru
      _
    // Predicated region
    $region38: #{tpu_custom_call.1} parent=1 // pred_check
      _
    $region39: #{tpu_custom_call.1} parent=1 // pred_check_branch
      %87 = sbr.rel (0) target = $region41
    $region40: #{tpu_custom_call.1} parent=1 // pred_region
      %88 = dma.done [#allocation10], 8192
    $region41: #{tpu_custom_call.1} parent=1 // pred_fallthru
      _
    // Predicated region
    $region42: #{tpu_custom_call.1} parent=1 // pred_check
      _
    $region43: #{tpu_custom_call.1} parent=1 // pred_check_branch
      %90 = sbr.rel (0) target = $region45
    $region44: #{tpu_custom_call.1} parent=1 // pred_region
      %91 = dma.done [#allocation10], 8192
    $region45: #{tpu_custom_call.1} parent=1 // pred_fallthru
      _
    %v92 = vld [vmem:[#allocation3] sm:$0xff]
    %v93 = vld [vmem:[#allocation3 + $0x8] sm:$0xff]
    %v94 = vld [vmem:[#allocation3 + $0x10] sm:$0xff]
    %v95 = vld [vmem:[#allocation3 + $0x18] sm:$0xff]
    %v96 = vld [vmem:[#allocation3 + $0x20] sm:$0xff]
    %v97 = vld [vmem:[#allocation3 + $0x28] sm:$0xff]
    %v98 = vld [vmem:[#allocation3 + $0x30] sm:$0xff]
    %v99 = vld [vmem:[#allocation3 + $0x38] sm:$0xff]
    %v100 = vld [vmem:[#allocation9] sm:$0xff]
    %v101 = vld [vmem:[#allocation9 + $0x8] sm:$0xff]
    %v102 = vld [vmem:[#allocation9 + $0x10] sm:$0xff]
    %v103 = vld [vmem:[#allocation9 + $0x18] sm:$0xff]
    %v104 = vld [vmem:[#allocation9 + $0x20] sm:$0xff]
    %v105 = vld [vmem:[#allocation9 + $0x28] sm:$0xff]
    %v106 = vld [vmem:[#allocation9 + $0x30] sm:$0xff]
    %v107 = vld [vmem:[#allocation9 + $0x38] sm:$0xff]
    %v108 = vld [vmem:[#allocation9 + $0x40] sm:$0xff]
    %v109 = vld [vmem:[#allocation9 + $0x48] sm:$0xff]
    %v110 = vld [vmem:[#allocation9 + $0x50] sm:$0xff]
    %v111 = vld [vmem:[#allocation9 + $0x58] sm:$0xff]
    %v112 = vld [vmem:[#allocation9 + $0x60] sm:$0xff]
    %v113 = vld [vmem:[#allocation9 + $0x68] sm:$0xff]
    %v114 = vld [vmem:[#allocation9 + $0x70] sm:$0xff]
    %v115 = vld [vmem:[#allocation9 + $0x78] sm:$0xff]
    %v116 = vld [vmem:[#allocation9 + $0x80] sm:$0xff]
    %v117 = vld [vmem:[#allocation9 + $0x88] sm:$0xff]
    %v118 = vld [vmem:[#allocation9 + $0x90] sm:$0xff]
    %v119 = vld [vmem:[#allocation9 + $0x98] sm:$0xff]
    %v120 = vld [vmem:[#allocation9 + $0xa0] sm:$0xff]
    %v121 = vld [vmem:[#allocation9 + $0xa8] sm:$0xff]
    %v122 = vld [vmem:[#allocation9 + $0xb0] sm:$0xff]
    %v123 = vld [vmem:[#allocation9 + $0xb8] sm:$0xff]
    %v124 = vld [vmem:[#allocation9 + $0xc0] sm:$0xff]
    %v125 = vld [vmem:[#allocation9 + $0xc8] sm:$0xff]
    %v126 = vld [vmem:[#allocation9 + $0xd0] sm:$0xff]
    %v127 = vld [vmem:[#allocation9 + $0xd8] sm:$0xff]
    %v128 = vld [vmem:[#allocation9 + $0xe0] sm:$0xff]
    %v129 = vld [vmem:[#allocation9 + $0xe8] sm:$0xff]
    %v130 = vld [vmem:[#allocation9 + $0xf0] sm:$0xff]
    %v131 = vld [vmem:[#allocation9 + $0xf8] sm:$0xff]
    %v132 = vld [vmem:[#allocation9 + $0x100] sm:$0xff]
    %v133 = vld [vmem:[#allocation9 + $0x108] sm:$0xff]
    %v134 = vld [vmem:[#allocation9 + $0x110] sm:$0xff]
    %v135 = vld [vmem:[#allocation9 + $0x118] sm:$0xff]
    %v136 = vld [vmem:[#allocation9 + $0x120] sm:$0xff]
    %v137 = vld [vmem:[#allocation9 + $0x128] sm:$0xff]
    %v138 = vld [vmem:[#allocation9 + $0x130] sm:$0xff]
    %v139 = vld [vmem:[#allocation9 + $0x138] sm:$0xff]
    %v140 = vld [vmem:[#allocation9 + $0x140] sm:$0xff]
    %v141 = vld [vmem:[#allocation9 + $0x148] sm:$0xff]
    %v142 = vld [vmem:[#allocation9 + $0x150] sm:$0xff]
    %v143 = vld [vmem:[#allocation9 + $0x158] sm:$0xff]
    %v144 = vld [vmem:[#allocation9 + $0x160] sm:$0xff]
    %v145 = vld [vmem:[#allocation9 + $0x168] sm:$0xff]
    %v146 = vld [vmem:[#allocation9 + $0x170] sm:$0xff]
    %v147 = vld [vmem:[#allocation9 + $0x178] sm:$0xff]
    %v148 = vld [vmem:[#allocation9 + $0x180] sm:$0xff]
    %v149 = vld [vmem:[#allocation9 + $0x188] sm:$0xff]
    %v150 = vld [vmem:[#allocation9 + $0x190] sm:$0xff]
    %v151 = vld [vmem:[#allocation9 + $0x198] sm:$0xff]
    %v152 = vld [vmem:[#allocation9 + $0x1a0] sm:$0xff]
    %v153 = vld [vmem:[#allocation9 + $0x1a8] sm:$0xff]
    %v154 = vld [vmem:[#allocation9 + $0x1b0] sm:$0xff]
    %v155 = vld [vmem:[#allocation9 + $0x1b8] sm:$0xff]
    %v156 = vld [vmem:[#allocation9 + $0x1c0] sm:$0xff]
    %v157 = vld [vmem:[#allocation9 + $0x1c8] sm:$0xff]
    %v158 = vld [vmem:[#allocation9 + $0x1d0] sm:$0xff]
    %v159 = vld [vmem:[#allocation9 + $0x1d8] sm:$0xff]
    %v160 = vld [vmem:[#allocation9 + $0x1e0] sm:$0xff]
    %v161 = vld [vmem:[#allocation9 + $0x1e8] sm:$0xff]
    %v162 = vld [vmem:[#allocation9 + $0x1f0] sm:$0xff]
    %v163 = vld [vmem:[#allocation9 + $0x1f8] sm:$0xff]
    %v164 = vld [vmem:[%s5] sm:$0xf]
    %v166 = vlaneseq
    %v167 = vshrl.u32 %v166, 7
    %v168 = vsub.s32 0, %v167
    %v169 = vrot.slane %v164, %v168
    %v170 = vlaneseq
    %v171 = vshrl.u32 %v170, 7
    %v172 = vsub.s32 1, %v171
    %v173 = vrot.slane %v164, %v172
    %v174 = vlaneseq
    %v175 = vshrl.u32 %v174, 7
    %v176 = vsub.s32 2, %v175
    %v177 = vrot.slane %v164, %v176
    %v178 = vlaneseq
    %v179 = vshrl.u32 %v178, 7
    %v180 = vsub.s32 3, %v179
    %v181 = vrot.slane %v164, %v180
    %186 = vmatprep.subr.mxu0 %v101
    %187 = vmatpush1.msra.mxu0 %v100
    %188 = vmatprep.subr.mxu0 %v105
    %189 = vmatpush1.msra.mxu0 %v104
    %190 = vmatprep.subr.mxu0 %v109
    %191 = vmatpush1.msra.mxu0 %v108
    %192 = vmatprep.subr.mxu0 %v113
    %193 = vmatpush1.msra.mxu0 %v112
    %194 = vmatprep.subr.mxu0 %v117
    %195 = vmatpush1.msra.mxu0 %v116
    %196 = vmatprep.subr.mxu0 %v121
    %197 = vmatpush1.msra.mxu0 %v120
    %198 = vmatprep.subr.mxu0 %v125
    %199 = vmatpush1.msra.mxu0 %v124
    %200 = vmatprep.subr.mxu0 %v129
    %201 = vmatpush1.msra.mxu0 %v128
    %202 = vmatprep.subr.mxu0 %v133
    %203 = vmatpush1.msra.mxu0 %v132
    %204 = vmatprep.subr.mxu0 %v137
    %205 = vmatpush1.msra.mxu0 %v136
    %206 = vmatprep.subr.mxu0 %v141
    %207 = vmatpush1.msra.mxu0 %v140
    %208 = vmatprep.subr.mxu0 %v145
    %209 = vmatpush1.msra.mxu0 %v144
    %210 = vmatprep.subr.mxu0 %v149
    %211 = vmatpush1.msra.mxu0 %v148
    %212 = vmatprep.subr.mxu0 %v153
    %213 = vmatpush1.msra.mxu0 %v152
    %214 = vmatprep.subr.mxu0 %v157
    %215 = vmatpush1.msra.mxu0 %v156
    %216 = vmatprep.subr.mxu0 %v161
    %217 = vmatpush1.msra.mxu0 %v160
    %218 = vmatprep.subr.mxu0 0.0
    %219 = vmatpush1.msra.mxu0 0.0
    %220 = vmatprep.subr.mxu0 0.0
    %221 = vmatpush1.msra.mxu0 0.0
    %222 = vmatprep.subr.mxu0 0.0
    %223 = vmatpush1.msra.mxu0 0.0
    %224 = vmatprep.subr.mxu0 0.0
    %225 = vmatpush1.msra.mxu0 0.0
    %226 = vmatprep.subr.mxu0 0.0
    %227 = vmatpush1.msra.mxu0 0.0
    %228 = vmatprep.subr.mxu0 0.0
    %229 = vmatpush1.msra.mxu0 0.0
    %230 = vmatprep.subr.mxu0 0.0
    %231 = vmatpush1.msra.mxu0 0.0
    %232 = vmatprep.subr.mxu0 0.0
    %233 = vmatpush1.msra.mxu0 0.0
    %234 = vmatprep.subr.mxu0 0.0
    %235 = vmatpush1.msra.mxu0 0.0
    %236 = vmatprep.subr.mxu0 0.0
    %237 = vmatpush1.msra.mxu0 0.0
    %238 = vmatprep.subr.mxu0 0.0
    %239 = vmatpush1.msra.mxu0 0.0
    %240 = vmatprep.subr.mxu0 0.0
    %241 = vmatpush1.msra.mxu0 0.0
    %242 = vmatprep.subr.mxu0 0.0
    %243 = vmatpush1.msra.mxu0 0.0
    %244 = vmatprep.subr.mxu0 0.0
    %245 = vmatpush1.msra.mxu0 0.0
    %246 = vmatprep.subr.mxu0 0.0
    %247 = vmatpush1.msra.mxu0 0.0
    %248 = vmatprep.subr.mxu0 0.0
    %249 = vmatpush1.msra.mxu0 0.0
    %250 = vmatprep.mubr.f32.mxu0 0.0
    %251 = vmatmul.mubr.f32.gmra.mrb[0].mxu0 %v92
    %v252 = vpop.f32.mrb[0].mxu0
    %v253 = vadd.f32 %v169, %v252
    %v254 = vpop.f32.mrb[0].mxu0
    %v255 = vadd.f32 %v173, %v254
    %256 = vmatprep.mubr.f32.mxu0 0.0
    %257 = vmatmul.mubr.f32.gmra.mrb[0].mxu0 %v93
    %v258 = vpop.f32.mrb[0].mxu0
    %v259 = vadd.f32 %v169, %v258
    %v260 = vpop.f32.mrb[0].mxu0
    %v261 = vadd.f32 %v173, %v260
    %262 = vmatprep.mubr.f32.mxu0 0.0
    %263 = vmatmul.mubr.f32.gmra.mrb[0].mxu0 %v94
    %v264 = vpop.f32.mrb[0].mxu0
    %v265 = vadd.f32 %v169, %v264
    %v266 = vpop.f32.mrb[0].mxu0
    %v267 = vadd.f32 %v173, %v266
    %268 = vmatprep.mubr.f32.mxu0 0.0
    %269 = vmatmul.mubr.f32.gmra.mrb[0].mxu0 %v95
    %v270 = vpop.f32.mrb[0].mxu0
    %v271 = vadd.f32 %v169, %v270
    %v272 = vpop.f32.mrb[0].mxu0
    %v273 = vadd.f32 %v173, %v272
    %274 = vmatprep.mubr.f32.mxu0 0.0
    %275 = vmatmul.mubr.f32.gmra.mrb[0].mxu0 %v96
    %v276 = vpop.f32.mrb[0].mxu0
    %v277 = vadd.f32 %v169, %v276
    %v278 = vpop.f32.mrb[0].mxu0
    %v279 = vadd.f32 %v173, %v278
    %280 = vmatprep.mubr.f32.mxu0 0.0
    %281 = vmatmul.mubr.f32.gmra.mrb[0].mxu0 %v97
    %v282 = vpop.f32.mrb[0].mxu0
    %v283 = vadd.f32 %v169, %v282
    %v284 = vpop.f32.mrb[0].mxu0
    %v285 = vadd.f32 %v173, %v284
    %286 = vmatprep.mubr.f32.mxu0 0.0
    %287 = vmatmul.mubr.f32.gmra.mrb[0].mxu0 %v98
    %v288 = vpop.f32.mrb[0].mxu0
    %v289 = vadd.f32 %v169, %v288
    %v290 = vpop.f32.mrb[0].mxu0
    %v291 = vadd.f32 %v173, %v290
    %292 = vmatprep.mubr.f32.mxu0 0.0
    %293 = vmatmul.mubr.f32.gmra.mrb[0].mxu0 %v99
    %v294 = vpop.f32.mrb[0].mxu0
    %v295 = vadd.f32 %v169, %v294
    %v296 = vpop.f32.mrb[0].mxu0
    %v297 = vadd.f32 %v173, %v296
    %298 = vdwg.mxu0
    %299 = vmatprep.subr.mxu0 %v103
    %300 = vmatpush1.msra.mxu0 %v102
    %301 = vmatprep.subr.mxu0 %v107
    %302 = vmatpush1.msra.mxu0 %v106
    %303 = vmatprep.subr.mxu0 %v111
    %304 = vmatpush1.msra.mxu0 %v110
    %305 = vmatprep.subr.mxu0 %v115
    %306 = vmatpush1.msra.mxu0 %v114
    %307 = vmatprep.subr.mxu0 %v119
    %308 = vmatpush1.msra.mxu0 %v118
    %309 = vmatprep.subr.mxu0 %v123
    %310 = vmatpush1.msra.mxu0 %v122
    %311 = vmatprep.subr.mxu0 %v127
    %312 = vmatpush1.msra.mxu0 %v126
    %313 = vmatprep.subr.mxu0 %v131
    %314 = vmatpush1.msra.mxu0 %v130
    %315 = vmatprep.subr.mxu0 %v135
    %316 = vmatpush1.msra.mxu0 %v134
    %317 = vmatprep.subr.mxu0 %v139
    %318 = vmatpush1.msra.mxu0 %v138
    %319 = vmatprep.subr.mxu0 %v143
    %320 = vmatpush1.msra.mxu0 %v142
    %321 = vmatprep.subr.mxu0 %v147
    %322 = vmatpush1.msra.mxu0 %v146
    %323 = vmatprep.subr.mxu0 %v151
    %324 = vmatpush1.msra.mxu0 %v150
    %325 = vmatprep.subr.mxu0 %v155
    %326 = vmatpush1.msra.mxu0 %v154
    %327 = vmatprep.subr.mxu0 %v159
    %328 = vmatpush1.msra.mxu0 %v158
    %329 = vmatprep.subr.mxu0 %v163
    %330 = vmatpush1.msra.mxu0 %v162
    %331 = vmatprep.subr.mxu0 0.0
    %332 = vmatpush1.msra.mxu0 0.0
    %333 = vmatprep.subr.mxu0 0.0
    %334 = vmatpush1.msra.mxu0 0.0
    %335 = vmatprep.subr.mxu0 0.0
    %336 = vmatpush1.msra.mxu0 0.0
    %337 = vmatprep.subr.mxu0 0.0
    %338 = vmatpush1.msra.mxu0 0.0
    %339 = vmatprep.subr.mxu0 0.0
    %340 = vmatpush1.msra.mxu0 0.0
    %341 = vmatprep.subr.mxu0 0.0
    %342 = vmatpush1.msra.mxu0 0.0
    %343 = vmatprep.subr.mxu0 0.0
    %344 = vmatpush1.msra.mxu0 0.0
    %345 = vmatprep.subr.mxu0 0.0
    %346 = vmatpush1.msra.mxu0 0.0
    %347 = vmatprep.subr.mxu0 0.0
    %348 = vmatpush1.msra.mxu0 0.0
    %349 = vmatprep.subr.mxu0 0.0
    %350 = vmatpush1.msra.mxu0 0.0
    %351 = vmatprep.subr.mxu0 0.0
    %352 = vmatpush1.msra.mxu0 0.0
    %353 = vmatprep.subr.mxu0 0.0
    %354 = vmatpush1.msra.mxu0 0.0
    %355 = vmatprep.subr.mxu0 0.0
    %356 = vmatpush1.msra.mxu0 0.0
    %357 = vmatprep.subr.mxu0 0.0
    %358 = vmatpush1.msra.mxu0 0.0
    %359 = vmatprep.subr.mxu0 0.0
    %360 = vmatpush1.msra.mxu0 0.0
    %361 = vmatprep.subr.mxu0 0.0
    %362 = vmatpush1.msra.mxu0 0.0
    %363 = vmatprep.mubr.f32.mxu0 0.0
    %364 = vmatmul.mubr.f32.gmra.mrb[0].mxu0 %v92
    %v365 = vpop.f32.mrb[0].mxu0
    %v366 = vadd.f32 %v177, %v365
    %v367 = vpop.f32.mrb[0].mxu0
    %v368 = vadd.f32 %v181, %v367
    %369 = vmatprep.mubr.f32.mxu0 0.0
    %370 = vmatmul.mubr.f32.gmra.mrb[0].mxu0 %v93
    %v371 = vpop.f32.mrb[0].mxu0
    %v372 = vadd.f32 %v177, %v371
    %v373 = vpop.f32.mrb[0].mxu0
    %v374 = vadd.f32 %v181, %v373
    %375 = vmatprep.mubr.f32.mxu0 0.0
    %376 = vmatmul.mubr.f32.gmra.mrb[0].mxu0 %v94
    %v377 = vpop.f32.mrb[0].mxu0
    %v378 = vadd.f32 %v177, %v377
    %v379 = vpop.f32.mrb[0].mxu0
    %v380 = vadd.f32 %v181, %v379
    %381 = vmatprep.mubr.f32.mxu0 0.0
    %382 = vmatmul.mubr.f32.gmra.mrb[0].mxu0 %v95
    %v383 = vpop.f32.mrb[0].mxu0
    %v384 = vadd.f32 %v177, %v383
    %v385 = vpop.f32.mrb[0].mxu0
    %v386 = vadd.f32 %v181, %v385
    %387 = vmatprep.mubr.f32.mxu0 0.0
    %388 = vmatmul.mubr.f32.gmra.mrb[0].mxu0 %v96
    %v389 = vpop.f32.mrb[0].mxu0
    %v390 = vadd.f32 %v177, %v389
    %v391 = vpop.f32.mrb[0].mxu0
    %v392 = vadd.f32 %v181, %v391
    %393 = vmatprep.mubr.f32.mxu0 0.0
    %394 = vmatmul.mubr.f32.gmra.mrb[0].mxu0 %v97
    %v395 = vpop.f32.mrb[0].mxu0
    %v396 = vadd.f32 %v177, %v395
    %v397 = vpop.f32.mrb[0].mxu0
    %v398 = vadd.f32 %v181, %v397
    %399 = vmatprep.mubr.f32.mxu0 0.0
    %400 = vmatmul.mubr.f32.gmra.mrb[0].mxu0 %v98
    %v401 = vpop.f32.mrb[0].mxu0
    %v402 = vadd.f32 %v177, %v401
    %v403 = vpop.f32.mrb[0].mxu0
    %v404 = vadd.f32 %v181, %v403
    %405 = vmatprep.mubr.f32.mxu0 0.0
    %406 = vmatmul.mubr.f32.gmra.mrb[0].mxu0 %v99
    %v407 = vpop.f32.mrb[0].mxu0
    %v408 = vadd.f32 %v177, %v407
    %v409 = vpop.f32.mrb[0].mxu0
    %v410 = vadd.f32 %v181, %v409
    %411 = vdwg.mxu0
    %412 = vst [vmem:[#allocation2] sm:$0xff] %v253
    %413 = vst [vmem:[#allocation2 + $0x8] sm:$0xff] %v255
    %414 = vst [vmem:[#allocation2 + $0x10] sm:$0xff] %v366
    %415 = vst [vmem:[#allocation2 + $0x18] sm:$0xff] %v368
    %416 = vst [vmem:[#allocation2 + $0x20] sm:$0xff] %v259
    %417 = vst [vmem:[#allocation2 + $0x28] sm:$0xff] %v261
    %418 = vst [vmem:[#allocation2 + $0x30] sm:$0xff] %v372
    %419 = vst [vmem:[#allocation2 + $0x38] sm:$0xff] %v374
    %420 = vst [vmem:[#allocation2 + $0x40] sm:$0xff] %v265
    %421 = vst [vmem:[#allocation2 + $0x48] sm:$0xff] %v267
    %422 = vst [vmem:[#allocation2 + $0x50] sm:$0xff] %v378
    %423 = vst [vmem:[#allocation2 + $0x58] sm:$0xff] %v380
    %424 = vst [vmem:[#allocation2 + $0x60] sm:$0xff] %v271
    %425 = vst [vmem:[#allocation2 + $0x68] sm:$0xff] %v273
    %426 = vst [vmem:[#allocation2 + $0x70] sm:$0xff] %v384
    %427 = vst [vmem:[#allocation2 + $0x78] sm:$0xff] %v386
    %428 = vst [vmem:[#allocation2 + $0x80] sm:$0xff] %v277
    %429 = vst [vmem:[#allocation2 + $0x88] sm:$0xff] %v279
    %430 = vst [vmem:[#allocation2 + $0x90] sm:$0xff] %v390
    %431 = vst [vmem:[#allocation2 + $0x98] sm:$0xff] %v392
    %432 = vst [vmem:[#allocation2 + $0xa0] sm:$0xff] %v283
    %433 = vst [vmem:[#allocation2 + $0xa8] sm:$0xff] %v285
    %434 = vst [vmem:[#allocation2 + $0xb0] sm:$0xff] %v396
    %435 = vst [vmem:[#allocation2 + $0xb8] sm:$0xff] %v398
    %436 = vst [vmem:[#allocation2 + $0xc0] sm:$0xff] %v289
    %437 = vst [vmem:[#allocation2 + $0xc8] sm:$0xff] %v291
    %438 = vst [vmem:[#allocation2 + $0xd0] sm:$0xff] %v402
    %439 = vst [vmem:[#allocation2 + $0xd8] sm:$0xff] %v404
    %440 = vst [vmem:[#allocation2 + $0xe0] sm:$0xff] %v295
    %441 = vst [vmem:[#allocation2 + $0xe8] sm:$0xff] %v297
    %442 = vst [vmem:[#allocation2 + $0xf0] sm:$0xff] %v408
    %443 = vst [vmem:[#allocation2 + $0xf8] sm:$0xff] %v410
    %v444 = vld [vmem:[#allocation11] sm:$0xff]
    %v445 = vld [vmem:[#allocation11 + $0x8] sm:$0xff]
    %v446 = vld [vmem:[#allocation11 + $0x10] sm:$0xff]
    %v447 = vld [vmem:[#allocation11 + $0x18] sm:$0xff]
    %v448 = vld [vmem:[#allocation11 + $0x20] sm:$0xff]
    %v449 = vld [vmem:[#allocation11 + $0x28] sm:$0xff]
    %v450 = vld [vmem:[#allocation11 + $0x30] sm:$0xff]
    %v451 = vld [vmem:[#allocation11 + $0x38] sm:$0xff]
    %v452 = vld [vmem:[#allocation11 + $0x40] sm:$0xff]
    %v453 = vld [vmem:[#allocation11 + $0x48] sm:$0xff]
    %v454 = vld [vmem:[#allocation11 + $0x50] sm:$0xff]
    %v455 = vld [vmem:[#allocation11 + $0x58] sm:$0xff]
    %v456 = vld [vmem:[#allocation11 + $0x60] sm:$0xff]
    %v457 = vld [vmem:[#allocation11 + $0x68] sm:$0xff]
    %v458 = vld [vmem:[#allocation11 + $0x70] sm:$0xff]
    %v459 = vld [vmem:[#allocation11 + $0x78] sm:$0xff]
    %v460 = vld [vmem:[#allocation11 + $0x80] sm:$0xff]
    %v461 = vld [vmem:[#allocation11 + $0x88] sm:$0xff]
    %v462 = vld [vmem:[#allocation11 + $0x90] sm:$0xff]
    %v463 = vld [vmem:[#allocation11 + $0x98] sm:$0xff]
    %v464 = vld [vmem:[#allocation11 + $0xa0] sm:$0xff]
    %v465 = vld [vmem:[#allocation11 + $0xa8] sm:$0xff]
    %v466 = vld [vmem:[#allocation11 + $0xb0] sm:$0xff]
    %v467 = vld [vmem:[#allocation11 + $0xb8] sm:$0xff]
    %v468 = vld [vmem:[#allocation11 + $0xc0] sm:$0xff]
    %v469 = vld [vmem:[#allocation11 + $0xc8] sm:$0xff]
    %v470 = vld [vmem:[#allocation11 + $0xd0] sm:$0xff]
    %v471 = vld [vmem:[#allocation11 + $0xd8] sm:$0xff]
    %v472 = vld [vmem:[#allocation11 + $0xe0] sm:$0xff]
    %v473 = vld [vmem:[#allocation11 + $0xe8] sm:$0xff]
    %v474 = vld [vmem:[#allocation11 + $0xf0] sm:$0xff]
    %v475 = vld [vmem:[#allocation11 + $0xf8] sm:$0xff]
    %v476 = vld [vmem:[#allocation11 + $0x100] sm:$0xff]
    %v477 = vld [vmem:[#allocation11 + $0x108] sm:$0xff]
    %v478 = vld [vmem:[#allocation11 + $0x110] sm:$0xff]
    %v479 = vld [vmem:[#allocation11 + $0x118] sm:$0xff]
    %v480 = vld [vmem:[#allocation11 + $0x120] sm:$0xff]
    %v481 = vld [vmem:[#allocation11 + $0x128] sm:$0xff]
    %v482 = vld [vmem:[#allocation11 + $0x130] sm:$0xff]
    %v483 = vld [vmem:[#allocation11 + $0x138] sm:$0xff]
    %v484 = vld [vmem:[#allocation11 + $0x140] sm:$0xff]
    %v485 = vld [vmem:[#allocation11 + $0x148] sm:$0xff]
    %v486 = vld [vmem:[#allocation11 + $0x150] sm:$0xff]
    %v487 = vld [vmem:[#allocation11 + $0x158] sm:$0xff]
    %v488 = vld [vmem:[#allocation11 + $0x160] sm:$0xff]
    %v489 = vld [vmem:[#allocation11 + $0x168] sm:$0xff]
    %v490 = vld [vmem:[#allocation11 + $0x170] sm:$0xff]
    %v491 = vld [vmem:[#allocation11 + $0x178] sm:$0xff]
    %v492 = vld [vmem:[#allocation11 + $0x180] sm:$0xff]
    %v493 = vld [vmem:[#allocation11 + $0x188] sm:$0xff]
    %v494 = vld [vmem:[#allocation11 + $0x190] sm:$0xff]
    %v495 = vld [vmem:[#allocation11 + $0x198] sm:$0xff]
    %v496 = vld [vmem:[#allocation11 + $0x1a0] sm:$0xff]
    %v497 = vld [vmem:[#allocation11 + $0x1a8] sm:$0xff]
    %v498 = vld [vmem:[#allocation11 + $0x1b0] sm:$0xff]
    %v499 = vld [vmem:[#allocation11 + $0x1b8] sm:$0xff]
    %v500 = vld [vmem:[#allocation11 + $0x1c0] sm:$0xff]
    %v501 = vld [vmem:[#allocation11 + $0x1c8] sm:$0xff]
    %v502 = vld [vmem:[#allocation11 + $0x1d0] sm:$0xff]
    %v503 = vld [vmem:[#allocation11 + $0x1d8] sm:$0xff]
    %v504 = vld [vmem:[#allocation11 + $0x1e0] sm:$0xff]
    %v505 = vld [vmem:[#allocation11 + $0x1e8] sm:$0xff]
    %v506 = vld [vmem:[#allocation11 + $0x1f0] sm:$0xff]
    %v507 = vld [vmem:[#allocation11 + $0x1f8] sm:$0xff]
    %v508 = vld [vmem:[#allocation6] sm:$0xff]
    %v509 = vld [vmem:[#allocation8] sm:$0xff]
    %v510 = vld [vmem:[#allocation2] sm:$0xff]
    %v511 = vld [vmem:[#allocation2 + $0x8] sm:$0xff]
    %v512 = vld [vmem:[#allocation2 + $0x10] sm:$0xff]
    %v513 = vld [vmem:[#allocation2 + $0x18] sm:$0xff]
    %514 = vmatprep.subr.mxu0 %v445
    %515 = vmatpush1.msra.mxu0 %v444
    %516 = vmatprep.subr.mxu0 %v449
    %517 = vmatpush1.msra.mxu0 %v448
    %518 = vmatprep.subr.mxu0 %v453
    %519 = vmatpush1.msra.mxu0 %v452
    %520 = vmatprep.subr.mxu0 %v457
    %521 = vmatpush1.msra.mxu0 %v456
    %522 = vmatprep.subr.mxu0 %v461
    %523 = vmatpush1.msra.mxu0 %v460
    %524 = vmatprep.subr.mxu0 %v465
    %525 = vmatpush1.msra.mxu0 %v464
    %526 = vmatprep.subr.mxu0 %v469
    %527 = vmatpush1.msra.mxu0 %v468
    %528 = vmatprep.subr.mxu0 %v473
    %529 = vmatpush1.msra.mxu0 %v472
    %530 = vmatprep.subr.mxu0 %v477
    %531 = vmatpush1.msra.mxu0 %v476
    %532 = vmatprep.subr.mxu0 %v481
    %533 = vmatpush1.msra.mxu0 %v480
    %534 = vmatprep.subr.mxu0 %v485
    %535 = vmatpush1.msra.mxu0 %v484
    %536 = vmatprep.subr.mxu0 %v489
    %537 = vmatpush1.msra.mxu0 %v488
    %538 = vmatprep.subr.mxu0 %v493
    %539 = vmatpush1.msra.mxu0 %v492
    %540 = vmatprep.subr.mxu0 %v497
    %541 = vmatpush1.msra.mxu0 %v496
    %542 = vmatprep.subr.mxu0 %v501
    %543 = vmatpush1.msra.mxu0 %v500
    %544 = vmatprep.subr.mxu0 %v505
    %545 = vmatpush1.msra.mxu0 %v504
    %546 = vmatprep.subr.mxu0 0.0
    %547 = vmatpush1.msra.mxu0 0.0
    %548 = vmatprep.subr.mxu0 0.0
    %549 = vmatpush1.msra.mxu0 0.0
    %550 = vmatprep.subr.mxu0 0.0
    %551 = vmatpush1.msra.mxu0 0.0
    %552 = vmatprep.subr.mxu0 0.0
    %553 = vmatpush1.msra.mxu0 0.0
    %554 = vmatprep.subr.mxu0 0.0
    %555 = vmatpush1.msra.mxu0 0.0
    %556 = vmatprep.subr.mxu0 0.0
    %557 = vmatpush1.msra.mxu0 0.0
    %558 = vmatprep.subr.mxu0 0.0
    %559 = vmatpush1.msra.mxu0 0.0
    %560 = vmatprep.subr.mxu0 0.0
    %561 = vmatpush1.msra.mxu0 0.0
    %562 = vmatprep.subr.mxu0 0.0
    %563 = vmatpush1.msra.mxu0 0.0
    %564 = vmatprep.subr.mxu0 0.0
    %565 = vmatpush1.msra.mxu0 0.0
    %566 = vmatprep.subr.mxu0 0.0
    %567 = vmatpush1.msra.mxu0 0.0
    %568 = vmatprep.subr.mxu0 0.0
    %569 = vmatpush1.msra.mxu0 0.0
    %570 = vmatprep.subr.mxu0 0.0
    %571 = vmatpush1.msra.mxu0 0.0
    %572 = vmatprep.subr.mxu0 0.0
    %573 = vmatpush1.msra.mxu0 0.0
    %574 = vmatprep.subr.mxu0 0.0
    %575 = vmatpush1.msra.mxu0 0.0
    %576 = vmatprep.subr.mxu0 0.0
    %577 = vmatpush1.msra.mxu0 0.0
    %578 = vmatprep.mubr.f32.mxu0 0.0
    %579 = vmatmul.mubr.f32.gmra.mrb[0].mxu0 %v508
    %v580 = vpop.f32.mrb[0].mxu0
    %v581 = vadd.f32 0.0, %v580
    %v582 = vpop.f32.mrb[0].mxu0
    %v583 = vadd.f32 0.0, %v582
    %584 = vdwg.mxu0
    %585 = vmatprep.subr.mxu0 %v447
    %586 = vmatpush1.msra.mxu0 %v446
    %587 = vmatprep.subr.mxu0 %v451
    %588 = vmatpush1.msra.mxu0 %v450
    %589 = vmatprep.subr.mxu0 %v455
    %590 = vmatpush1.msra.mxu0 %v454
    %591 = vmatprep.subr.mxu0 %v459
    %592 = vmatpush1.msra.mxu0 %v458
    %593 = vmatprep.subr.mxu0 %v463
    %594 = vmatpush1.msra.mxu0 %v462
    %595 = vmatprep.subr.mxu0 %v467
    %596 = vmatpush1.msra.mxu0 %v466
    %597 = vmatprep.subr.mxu0 %v471
    %598 = vmatpush1.msra.mxu0 %v470
    %599 = vmatprep.subr.mxu0 %v475
    %600 = vmatpush1.msra.mxu0 %v474
    %601 = vmatprep.subr.mxu0 %v479
    %602 = vmatpush1.msra.mxu0 %v478
    %603 = vmatprep.subr.mxu0 %v483
    %604 = vmatpush1.msra.mxu0 %v482
    %605 = vmatprep.subr.mxu0 %v487
    %606 = vmatpush1.msra.mxu0 %v486
    %607 = vmatprep.subr.mxu0 %v491
    %608 = vmatpush1.msra.mxu0 %v490
    %609 = vmatprep.subr.mxu0 %v495
    %610 = vmatpush1.msra.mxu0 %v494
    %611 = vmatprep.subr.mxu0 %v499
    %612 = vmatpush1.msra.mxu0 %v498
    %613 = vmatprep.subr.mxu0 %v503
    %614 = vmatpush1.msra.mxu0 %v502
    %615 = vmatprep.subr.mxu0 %v507
    %616 = vmatpush1.msra.mxu0 %v506
    %617 = vmatprep.subr.mxu0 0.0
    %618 = vmatpush1.msra.mxu0 0.0
    %619 = vmatprep.subr.mxu0 0.0
    %620 = vmatpush1.msra.mxu0 0.0
    %621 = vmatprep.subr.mxu0 0.0
    %622 = vmatpush1.msra.mxu0 0.0
    %623 = vmatprep.subr.mxu0 0.0
    %624 = vmatpush1.msra.mxu0 0.0
    %625 = vmatprep.subr.mxu0 0.0
    %626 = vmatpush1.msra.mxu0 0.0
    %627 = vmatprep.subr.mxu0 0.0
    %628 = vmatpush1.msra.mxu0 0.0
    %629 = vmatprep.subr.mxu0 0.0
    %630 = vmatpush1.msra.mxu0 0.0
    %631 = vmatprep.subr.mxu0 0.0
    %632 = vmatpush1.msra.mxu0 0.0
    %633 = vmatprep.subr.mxu0 0.0
    %634 = vmatpush1.msra.mxu0 0.0
    %635 = vmatprep.subr.mxu0 0.0
    %636 = vmatpush1.msra.mxu0 0.0
    %637 = vmatprep.subr.mxu0 0.0
    %638 = vmatpush1.msra.mxu0 0.0
    %639 = vmatprep.subr.mxu0 0.0
    %640 = vmatpush1.msra.mxu0 0.0
    %641 = vmatprep.subr.mxu0 0.0
    %642 = vmatpush1.msra.mxu0 0.0
    %643 = vmatprep.subr.mxu0 0.0
    %644 = vmatpush1.msra.mxu0 0.0
    %645 = vmatprep.subr.mxu0 0.0
    %646 = vmatpush1.msra.mxu0 0.0
    %647 = vmatprep.subr.mxu0 0.0
    %648 = vmatpush1.msra.mxu0 0.0
    %649 = vmatprep.mubr.f32.mxu0 0.0
    %650 = vmatmul.mubr.f32.gmra.mrb[0].mxu0 %v508
    %v651 = vpop.f32.mrb[0].mxu0
    %v652 = vadd.f32 0.0, %v651
    %v653 = vpop.f32.mrb[0].mxu0
    %v654 = vadd.f32 0.0, %v653
    %655 = vdwg.mxu0
    %v656 = vadd.f32 %v510, %v581
    %v657 = vadd.f32 %v511, %v583
    %v658 = vadd.f32 %v512, %v652
    %v659 = vadd.f32 %v513, %v654
    %v660 = vxor.u32 %v656, 2147483648
    %v661 = vmul.f32 %v660, 1.442695
    %v662 = vpow.pop %v661
    %v663 = vadd.f32 %v662, 1.0
    %v664 = vrcp.pop %v663
    %v665 = vmul.f32 1.0, %v664
    %v666 = vxor.u32 %v657, 2147483648
    %v667 = vmul.f32 %v666, 1.442695
    %v668 = vpow.pop %v667
    %v669 = vadd.f32 %v668, 1.0
    %v670 = vrcp.pop %v669
    %v671 = vmul.f32 1.0, %v670
    %v672 = vtanh.pop %v658
    %v673 = vxor.u32 %v659, 2147483648
    %v674 = vmul.f32 %v673, 1.442695
    %v675 = vpow.pop %v674
    %v676 = vadd.f32 %v675, 1.0
    %v677 = vrcp.pop %v676
    %v678 = vmul.f32 1.0, %v677
    %v679 = vmul.f32 %v671, %v509
    %v680 = vmul.f32 %v665, %v672
    %v681 = vadd.f32 %v679, %v680
    %v682 = vtanh.pop %v681
    %v683 = vmul.f32 %v678, %v682
    %684 = vst [vmem:[#allocation12] sm:$0xff] %v683
    %v685 = vld [vmem:[#allocation2 + $0x20] sm:$0xff]
    %v686 = vld [vmem:[#allocation2 + $0x28] sm:$0xff]
    %v687 = vld [vmem:[#allocation2 + $0x30] sm:$0xff]
    %v688 = vld [vmem:[#allocation2 + $0x38] sm:$0xff]
    %689 = vmatprep.subr.mxu0 %v445
    %690 = vmatpush1.msra.mxu0 %v444
    %691 = vmatprep.subr.mxu0 %v449
    %692 = vmatpush1.msra.mxu0 %v448
    %693 = vmatprep.subr.mxu0 %v453
    %694 = vmatpush1.msra.mxu0 %v452
    %695 = vmatprep.subr.mxu0 %v457
    %696 = vmatpush1.msra.mxu0 %v456
    %697 = vmatprep.subr.mxu0 %v461
    %698 = vmatpush1.msra.mxu0 %v460
    %699 = vmatprep.subr.mxu0 %v465
    %700 = vmatpush1.msra.mxu0 %v464
    %701 = vmatprep.subr.mxu0 %v469
    %702 = vmatpush1.msra.mxu0 %v468
    %703 = vmatprep.subr.mxu0 %v473
    %704 = vmatpush1.msra.mxu0 %v472
    %705 = vmatprep.subr.mxu0 %v477
    %706 = vmatpush1.msra.mxu0 %v476
    %707 = vmatprep.subr.mxu0 %v481
    %708 = vmatpush1.msra.mxu0 %v480
    %709 = vmatprep.subr.mxu0 %v485
    %710 = vmatpush1.msra.mxu0 %v484
    %711 = vmatprep.subr.mxu0 %v489
    %712 = vmatpush1.msra.mxu0 %v488
    %713 = vmatprep.subr.mxu0 %v493
    %714 = vmatpush1.msra.mxu0 %v492
    %715 = vmatprep.subr.mxu0 %v497
    %716 = vmatpush1.msra.mxu0 %v496
    %717 = vmatprep.subr.mxu0 %v501
    %718 = vmatpush1.msra.mxu0 %v500
    %719 = vmatprep.subr.mxu0 %v505
    %720 = vmatpush1.msra.mxu0 %v504
    %721 = vmatprep.subr.mxu0 0.0
    %722 = vmatpush1.msra.mxu0 0.0
    %723 = vmatprep.subr.mxu0 0.0
    %724 = vmatpush1.msra.mxu0 0.0
    %725 = vmatprep.subr.mxu0 0.0
    %726 = vmatpush1.msra.mxu0 0.0
    %727 = vmatprep.subr.mxu0 0.0
    %728 = vmatpush1.msra.mxu0 0.0
    %729 = vmatprep.subr.mxu0 0.0
    %730 = vmatpush1.msra.mxu0 0.0
    %731 = vmatprep.subr.mxu0 0.0
    %732 = vmatpush1.msra.mxu0 0.0
    %733 = vmatprep.subr.mxu0 0.0
    %734 = vmatpush1.msra.mxu0 0.0
    %735 = vmatprep.subr.mxu0 0.0
    %736 = vmatpush1.msra.mxu0 0.0
    %737 = vmatprep.subr.mxu0 0.0
    %738 = vmatpush1.msra.mxu0 0.0
    %739 = vmatprep.subr.mxu0 0.0
    %740 = vmatpush1.msra.mxu0 0.0
    %741 = vmatprep.subr.mxu0 0.0
    %742 = vmatpush1.msra.mxu0 0.0
    %743 = vmatprep.subr.mxu0 0.0
    %744 = vmatpush1.msra.mxu0 0.0
    %745 = vmatprep.subr.mxu0 0.0
    %746 = vmatpush1.msra.mxu0 0.0
    %747 = vmatprep.subr.mxu0 0.0
    %748 = vmatpush1.msra.mxu0 0.0
    %749 = vmatprep.subr.mxu0 0.0
    %750 = vmatpush1.msra.mxu0 0.0
    %751 = vmatprep.subr.mxu0 0.0
    %752 = vmatpush1.msra.mxu0 0.0
    %753 = vmatprep.mubr.f32.mxu0 0.0
    %754 = vmatmul.mubr.f32.gmra.mrb[0].mxu0 %v683
    %v755 = vpop.f32.mrb[0].mxu0
    %v756 = vadd.f32 0.0, %v755
    %v757 = vpop.f32.mrb[0].mxu0
    %v758 = vadd.f32 0.0, %v757
    %759 = vdwg.mxu0
    %760 = vmatprep.subr.mxu0 %v447
    %761 = vmatpush1.msra.mxu0 %v446
    %762 = vmatprep.subr.mxu0 %v451
    %763 = vmatpush1.msra.mxu0 %v450
    %764 = vmatprep.subr.mxu0 %v455
    %765 = vmatpush1.msra.mxu0 %v454
    %766 = vmatprep.subr.mxu0 %v459
    %767 = vmatpush1.msra.mxu0 %v458
    %768 = vmatprep.subr.mxu0 %v463
    %769 = vmatpush1.msra.mxu0 %v462
    %770 = vmatprep.subr.mxu0 %v467
    %771 = vmatpush1.msra.mxu0 %v466
    %772 = vmatprep.subr.mxu0 %v471
    %773 = vmatpush1.msra.mxu0 %v470
    %774 = vmatprep.subr.mxu0 %v475
    %775 = vmatpush1.msra.mxu0 %v474
    %776 = vmatprep.subr.mxu0 %v479
    %777 = vmatpush1.msra.mxu0 %v478
    %778 = vmatprep.subr.mxu0 %v483
    %779 = vmatpush1.msra.mxu0 %v482
    %780 = vmatprep.subr.mxu0 %v487
    %781 = vmatpush1.msra.mxu0 %v486
    %782 = vmatprep.subr.mxu0 %v491
    %783 = vmatpush1.msra.mxu0 %v490
    %784 = vmatprep.subr.mxu0 %v495
    %785 = vmatpush1.msra.mxu0 %v494
    %786 = vmatprep.subr.mxu0 %v499
    %787 = vmatpush1.msra.mxu0 %v498
    %788 = vmatprep.subr.mxu0 %v503
    %789 = vmatpush1.msra.mxu0 %v502
    %790 = vmatprep.subr.mxu0 %v507
    %791 = vmatpush1.msra.mxu0 %v506
    %792 = vmatprep.subr.mxu0 0.0
    %793 = vmatpush1.msra.mxu0 0.0
    %794 = vmatprep.subr.mxu0 0.0
    %795 = vmatpush1.msra.mxu0 0.0
    %796 = vmatprep.subr.mxu0 0.0
    %797 = vmatpush1.msra.mxu0 0.0
    %798 = vmatprep.subr.mxu0 0.0
    %799 = vmatpush1.msra.mxu0 0.0
    %800 = vmatprep.subr.mxu0 0.0
    %801 = vmatpush1.msra.mxu0 0.0
    %802 = vmatprep.subr.mxu0 0.0
    %803 = vmatpush1.msra.mxu0 0.0
    %804 = vmatprep.subr.mxu0 0.0
    %805 = vmatpush1.msra.mxu0 0.0
    %806 = vmatprep.subr.mxu0 0.0
    %807 = vmatpush1.msra.mxu0 0.0
    %808 = vmatprep.subr.mxu0 0.0
    %809 = vmatpush1.msra.mxu0 0.0
    %810 = vmatprep.subr.mxu0 0.0
    %811 = vmatpush1.msra.mxu0 0.0
    %812 = vmatprep.subr.mxu0 0.0
    %813 = vmatpush1.msra.mxu0 0.0
    %814 = vmatprep.subr.mxu0 0.0
    %815 = vmatpush1.msra.mxu0 0.0
    %816 = vmatprep.subr.mxu0 0.0
    %817 = vmatpush1.msra.mxu0 0.0
    %818 = vmatprep.subr.mxu0 0.0
    %819 = vmatpush1.msra.mxu0 0.0
    %820 = vmatprep.subr.mxu0 0.0
    %821 = vmatpush1.msra.mxu0 0.0
    %822 = vmatprep.subr.mxu0 0.0
    %823 = vmatpush1.msra.mxu0 0.0
    %824 = vmatprep.mubr.f32.mxu0 0.0
    %825 = vmatmul.mubr.f32.gmra.mrb[0].mxu0 %v683
    %v826 = vpop.f32.mrb[0].mxu0
    %v827 = vadd.f32 0.0, %v826
    %v828 = vpop.f32.mrb[0].mxu0
    %v829 = vadd.f32 0.0, %v828
    %830 = vdwg.mxu0
    %v831 = vadd.f32 %v685, %v756
    %v832 = vadd.f32 %v686, %v758
    %v833 = vadd.f32 %v687, %v827
    %v834 = vadd.f32 %v688, %v829
    %v835 = vxor.u32 %v831, 2147483648
    %v836 = vmul.f32 %v835, 1.442695
    %v837 = vpow.pop %v836
    %v838 = vadd.f32 %v837, 1.0
    %v839 = vrcp.pop %v838
    %v840 = vmul.f32 1.0, %v839
    %v841 = vxor.u32 %v832, 2147483648
    %v842 = vmul.f32 %v841, 1.442695
    %v843 = vpow.pop %v842
    %v844 = vadd.f32 %v843, 1.0
    %v845 = vrcp.pop %v844
    %v846 = vmul.f32 1.0, %v845
    %v847 = vtanh.pop %v833
    %v848 = vxor.u32 %v834, 2147483648
    %v849 = vmul.f32 %v848, 1.442695
    %v850 = vpow.pop %v849
    %v851 = vadd.f32 %v850, 1.0
    %v852 = vrcp.pop %v851
    %v853 = vmul.f32 1.0, %v852
    %v854 = vmul.f32 %v846, %v681
    %v855 = vmul.f32 %v840, %v847
    %v856 = vadd.f32 %v854, %v855
    %v857 = vtanh.pop %v856
    %v858 = vmul.f32 %v853, %v857
    %s859 = scalar_lea.vmem [#allocation12], 8
    %860 = vst [vmem:[%s859] sm:$0xff] %v858
    %v861 = vld [vmem:[#allocation2 + $0x40] sm:$0xff]
    %v862 = vld [vmem:[#allocation2 + $0x48] sm:$0xff]
    %v863 = vld [vmem:[#allocation2 + $0x50] sm:$0xff]
    %v864 = vld [vmem:[#allocation2 + $0x58] sm:$0xff]
    %865 = vmatprep.subr.mxu0 %v445
    %866 = vmatpush1.msra.mxu0 %v444
    %867 = vmatprep.subr.mxu0 %v449
    %868 = vmatpush1.msra.mxu0 %v448
    %869 = vmatprep.subr.mxu0 %v453
    %870 = vmatpush1.msra.mxu0 %v452
    %871 = vmatprep.subr.mxu0 %v457
    %872 = vmatpush1.msra.mxu0 %v456
    %873 = vmatprep.subr.mxu0 %v461
    %874 = vmatpush1.msra.mxu0 %v460
    %875 = vmatprep.subr.mxu0 %v465
    %876 = vmatpush1.msra.mxu0 %v464
    %877 = vmatprep.subr.mxu0 %v469
    %878 = vmatpush1.msra.mxu0 %v468
    %879 = vmatprep.subr.mxu0 %v473
    %880 = vmatpush1.msra.mxu0 %v472
    %881 = vmatprep.subr.mxu0 %v477
    %882 = vmatpush1.msra.mxu0 %v476
    %883 = vmatprep.subr.mxu0 %v481
    %884 = vmatpush1.msra.mxu0 %v480
    %885 = vmatprep.subr.mxu0 %v485
    %886 = vmatpush1.msra.mxu0 %v484
    %887 = vmatprep.subr.mxu0 %v489
    %888 = vmatpush1.msra.mxu0 %v488
    %889 = vmatprep.subr.mxu0 %v493
    %890 = vmatpush1.msra.mxu0 %v492
    %891 = vmatprep.subr.mxu0 %v497
    %892 = vmatpush1.msra.mxu0 %v496
    %893 = vmatprep.subr.mxu0 %v501
    %894 = vmatpush1.msra.mxu0 %v500
    %895 = vmatprep.subr.mxu0 %v505
    %896 = vmatpush1.msra.mxu0 %v504
    %897 = vmatprep.subr.mxu0 0.0
    %898 = vmatpush1.msra.mxu0 0.0
    %899 = vmatprep.subr.mxu0 0.0
    %900 = vmatpush1.msra.mxu0 0.0
    %901 = vmatprep.subr.mxu0 0.0
    %902 = vmatpush1.msra.mxu0 0.0
    %903 = vmatprep.subr.mxu0 0.0
    %904 = vmatpush1.msra.mxu0 0.0
    %905 = vmatprep.subr.mxu0 0.0
    %906 = vmatpush1.msra.mxu0 0.0
    %907 = vmatprep.subr.mxu0 0.0
    %908 = vmatpush1.msra.mxu0 0.0
    %909 = vmatprep.subr.mxu0 0.0
    %910 = vmatpush1.msra.mxu0 0.0
    %911 = vmatprep.subr.mxu0 0.0
    %912 = vmatpush1.msra.mxu0 0.0
    %913 = vmatprep.subr.mxu0 0.0
    %914 = vmatpush1.msra.mxu0 0.0
    %915 = vmatprep.subr.mxu0 0.0
    %916 = vmatpush1.msra.mxu0 0.0
    %917 = vmatprep.subr.mxu0 0.0
    %918 = vmatpush1.msra.mxu0 0.0
    %919 = vmatprep.subr.mxu0 0.0
    %920 = vmatpush1.msra.mxu0 0.0
    %921 = vmatprep.subr.mxu0 0.0
    %922 = vmatpush1.msra.mxu0 0.0
    %923 = vmatprep.subr.mxu0 0.0
    %924 = vmatpush1.msra.mxu0 0.0
    %925 = vmatprep.subr.mxu0 0.0
    %926 = vmatpush1.msra.mxu0 0.0
    %927 = vmatprep.subr.mxu0 0.0
    %928 = vmatpush1.msra.mxu0 0.0
    %929 = vmatprep.mubr.f32.mxu0 0.0
    %930 = vmatmul.mubr.f32.gmra.mrb[0].mxu0 %v858
    %v931 = vpop.f32.mrb[0].mxu0
    %v932 = vadd.f32 0.0, %v931
    %v933 = vpop.f32.mrb[0].mxu0
    %v934 = vadd.f32 0.0, %v933
    %935 = vdwg.mxu0
    %936 = vmatprep.subr.mxu0 %v447
    %937 = vmatpush1.msra.mxu0 %v446
    %938 = vmatprep.subr.mxu0 %v451
    %939 = vmatpush1.msra.mxu0 %v450
    %940 = vmatprep.subr.mxu0 %v455
    %941 = vmatpush1.msra.mxu0 %v454
    %942 = vmatprep.subr.mxu0 %v459
    %943 = vmatpush1.msra.mxu0 %v458
    %944 = vmatprep.subr.mxu0 %v463
    %945 = vmatpush1.msra.mxu0 %v462
    %946 = vmatprep.subr.mxu0 %v467
    %947 = vmatpush1.msra.mxu0 %v466
    %948 = vmatprep.subr.mxu0 %v471
    %949 = vmatpush1.msra.mxu0 %v470
    %950 = vmatprep.subr.mxu0 %v475
    %951 = vmatpush1.msra.mxu0 %v474
    %952 = vmatprep.subr.mxu0 %v479
    %953 = vmatpush1.msra.mxu0 %v478
    %954 = vmatprep.subr.mxu0 %v483
    %955 = vmatpush1.msra.mxu0 %v482
    %956 = vmatprep.subr.mxu0 %v487
    %957 = vmatpush1.msra.mxu0 %v486
    %958 = vmatprep.subr.mxu0 %v491
    %959 = vmatpush1.msra.mxu0 %v490
    %960 = vmatprep.subr.mxu0 %v495
    %961 = vmatpush1.msra.mxu0 %v494
    %962 = vmatprep.subr.mxu0 %v499
    %963 = vmatpush1.msra.mxu0 %v498
    %964 = vmatprep.subr.mxu0 %v503
    %965 = vmatpush1.msra.mxu0 %v502
    %966 = vmatprep.subr.mxu0 %v507
    %967 = vmatpush1.msra.mxu0 %v506
    %968 = vmatprep.subr.mxu0 0.0
    %969 = vmatpush1.msra.mxu0 0.0
    %970 = vmatprep.subr.mxu0 0.0
    %971 = vmatpush1.msra.mxu0 0.0
    %972 = vmatprep.subr.mxu0 0.0
    %973 = vmatpush1.msra.mxu0 0.0
    %974 = vmatprep.subr.mxu0 0.0
    %975 = vmatpush1.msra.mxu0 0.0
    %976 = vmatprep.subr.mxu0 0.0
    %977 = vmatpush1.msra.mxu0 0.0
    %978 = vmatprep.subr.mxu0 0.0
    %979 = vmatpush1.msra.mxu0 0.0
    %980 = vmatprep.subr.mxu0 0.0
    %981 = vmatpush1.msra.mxu0 0.0
    %982 = vmatprep.subr.mxu0 0.0
    %983 = vmatpush1.msra.mxu0 0.0
    %984 = vmatprep.subr.mxu0 0.0
    %985 = vmatpush1.msra.mxu0 0.0
    %986 = vmatprep.subr.mxu0 0.0
    %987 = vmatpush1.msra.mxu0 0.0
    %988 = vmatprep.subr.mxu0 0.0
    %989 = vmatpush1.msra.mxu0 0.0
    %990 = vmatprep.subr.mxu0 0.0
    %991 = vmatpush1.msra.mxu0 0.0
    %992 = vmatprep.subr.mxu0 0.0
    %993 = vmatpush1.msra.mxu0 0.0
    %994 = vmatprep.subr.mxu0 0.0
    %995 = vmatpush1.msra.mxu0 0.0
    %996 = vmatprep.subr.mxu0 0.0
    %997 = vmatpush1.msra.mxu0 0.0
    %998 = vmatprep.subr.mxu0 0.0
    %999 = vmatpush1.msra.mxu0 0.0
    %1000 = vmatprep.mubr.f32.mxu0 0.0
    %1001 = vmatmul.mubr.f32.gmra.mrb[0].mxu0 %v858
    %v1002 = vpop.f32.mrb[0].mxu0
    %v1003 = vadd.f32 0.0, %v1002
    %v1004 = vpop.f32.mrb[0].mxu0
    %v1005 = vadd.f32 0.0, %v1004
    %1006 = vdwg.mxu0
    %v1007 = vadd.f32 %v861, %v932
    %v1008 = vadd.f32 %v862, %v934
    %v1009 = vadd.f32 %v863, %v1003
    %v1010 = vadd.f32 %v864, %v1005
    %v1011 = vxor.u32 %v1007, 2147483648
    %v1012 = vmul.f32 %v1011, 1.442695
    %v1013 = vpow.pop %v1012
    %v1014 = vadd.f32 %v1013, 1.0
    %v1015 = vrcp.pop %v1014
    %v1016 = vmul.f32 1.0, %v1015
    %v1017 = vxor.u32 %v1008, 2147483648
    %v1018 = vmul.f32 %v1017, 1.442695
    %v1019 = vpow.pop %v1018
    %v1020 = vadd.f32 %v1019, 1.0
    %v1021 = vrcp.pop %v1020
    %v1022 = vmul.f32 1.0, %v1021
    %v1023 = vtanh.pop %v1009
    %v1024 = vxor.u32 %v1010, 2147483648
    %v1025 = vmul.f32 %v1024, 1.442695
    %v1026 = vpow.pop %v1025
    %v1027 = vadd.f32 %v1026, 1.0
    %v1028 = vrcp.pop %v1027
    %v1029 = vmul.f32 1.0, %v1028
    %v1030 = vmul.f32 %v1022, %v856
    %v1031 = vmul.f32 %v1016, %v1023
    %v1032 = vadd.f32 %v1030, %v1031
    %v1033 = vtanh.pop %v1032
    %v1034 = vmul.f32 %v1029, %v1033
    %s1035 = scalar_lea.vmem [#allocation12], 16
    %1036 = vst [vmem:[%s1035] sm:$0xff] %v1034
    %v1037 = vld [vmem:[#allocation2 + $0x60] sm:$0xff]
    %v1038 = vld [vmem:[#allocation2 + $0x68] sm:$0xff]
    %v1039 = vld [vmem:[#allocation2 + $0x70] sm:$0xff]
    %v1040 = vld [vmem:[#allocation2 + $0x78] sm:$0xff]
    %1041 = vmatprep.subr.mxu0 %v445
    %1042 = vmatpush1.msra.mxu0 %v444
    %1043 = vmatprep.subr.mxu0 %v449
    %1044 = vmatpush1.msra.mxu0 %v448
    %1045 = vmatprep.subr.mxu0 %v453
    %1046 = vmatpush1.msra.mxu0 %v452
    %1047 = vmatprep.subr.mxu0 %v457
    %1048 = vmatpush1.msra.mxu0 %v456
    %1049 = vmatprep.subr.mxu0 %v461
    %1050 = vmatpush1.msra.mxu0 %v460
    %1051 = vmatprep.subr.mxu0 %v465
    %1052 = vmatpush1.msra.mxu0 %v464
    %1053 = vmatprep.subr.mxu0 %v469
    %1054 = vmatpush1.msra.mxu0 %v468
    %1055 = vmatprep.subr.mxu0 %v473
    %1056 = vmatpush1.msra.mxu0 %v472
    %1057 = vmatprep.subr.mxu0 %v477
    %1058 = vmatpush1.msra.mxu0 %v476
    %1059 = vmatprep.subr.mxu0 %v481
    %1060 = vmatpush1.msra.mxu0 %v480
    %1061 = vmatprep.subr.mxu0 %v485
    %1062 = vmatpush1.msra.mxu0 %v484
    %1063 = vmatprep.subr.mxu0 %v489
    %1064 = vmatpush1.msra.mxu0 %v488
    %1065 = vmatprep.subr.mxu0 %v493
    %1066 = vmatpush1.msra.mxu0 %v492
    %1067 = vmatprep.subr.mxu0 %v497
    %1068 = vmatpush1.msra.mxu0 %v496
    %1069 = vmatprep.subr.mxu0 %v501
    %1070 = vmatpush1.msra.mxu0 %v500
    %1071 = vmatprep.subr.mxu0 %v505
    %1072 = vmatpush1.msra.mxu0 %v504
    %1073 = vmatprep.subr.mxu0 0.0
    %1074 = vmatpush1.msra.mxu0 0.0
    %1075 = vmatprep.subr.mxu0 0.0
    %1076 = vmatpush1.msra.mxu0 0.0
    %1077 = vmatprep.subr.mxu0 0.0
    %1078 = vmatpush1.msra.mxu0 0.0
    %1079 = vmatprep.subr.mxu0 0.0
    %1080 = vmatpush1.msra.mxu0 0.0
    %1081 = vmatprep.subr.mxu0 0.0
    %1082 = vmatpush1.msra.mxu0 0.0
    %1083 = vmatprep.subr.mxu0 0.0
    %1084 = vmatpush1.msra.mxu0 0.0
    %1085 = vmatprep.subr.mxu0 0.0
    %1086 = vmatpush1.msra.mxu0 0.0
    %1087 = vmatprep.subr.mxu0 0.0
    %1088 = vmatpush1.msra.mxu0 0.0
    %1089 = vmatprep.subr.mxu0 0.0
    %1090 = vmatpush1.msra.mxu0 0.0
    %1091 = vmatprep.subr.mxu0 0.0
    %1092 = vmatpush1.msra.mxu0 0.0
    %1093 = vmatprep.subr.mxu0 0.0
    %1094 = vmatpush1.msra.mxu0 0.0
    %1095 = vmatprep.subr.mxu0 0.0
    %1096 = vmatpush1.msra.mxu0 0.0
    %1097 = vmatprep.subr.mxu0 0.0
    %1098 = vmatpush1.msra.mxu0 0.0
    %1099 = vmatprep.subr.mxu0 0.0
    %1100 = vmatpush1.msra.mxu0 0.0
    %1101 = vmatprep.subr.mxu0 0.0
    %1102 = vmatpush1.msra.mxu0 0.0
    %1103 = vmatprep.subr.mxu0 0.0
    %1104 = vmatpush1.msra.mxu0 0.0
    %1105 = vmatprep.mubr.f32.mxu0 0.0
    %1106 = vmatmul.mubr.f32.gmra.mrb[0].mxu0 %v1034
    %v1107 = vpop.f32.mrb[0].mxu0
    %v1108 = vadd.f32 0.0, %v1107
    %v1109 = vpop.f32.mrb[0].mxu0
    %v1110 = vadd.f32 0.0, %v1109
    %1111 = vdwg.mxu0
    %1112 = vmatprep.subr.mxu0 %v447
    %1113 = vmatpush1.msra.mxu0 %v446
    %1114 = vmatprep.subr.mxu0 %v451
    %1115 = vmatpush1.msra.mxu0 %v450
    %1116 = vmatprep.subr.mxu0 %v455
    %1117 = vmatpush1.msra.mxu0 %v454
    %1118 = vmatprep.subr.mxu0 %v459
    %1119 = vmatpush1.msra.mxu0 %v458
    %1120 = vmatprep.subr.mxu0 %v463
    %1121 = vmatpush1.msra.mxu0 %v462
    %1122 = vmatprep.subr.mxu0 %v467
    %1123 = vmatpush1.msra.mxu0 %v466
    %1124 = vmatprep.subr.mxu0 %v471
    %1125 = vmatpush1.msra.mxu0 %v470
    %1126 = vmatprep.subr.mxu0 %v475
    %1127 = vmatpush1.msra.mxu0 %v474
    %1128 = vmatprep.subr.mxu0 %v479
    %1129 = vmatpush1.msra.mxu0 %v478
    %1130 = vmatprep.subr.mxu0 %v483
    %1131 = vmatpush1.msra.mxu0 %v482
    %1132 = vmatprep.subr.mxu0 %v487
    %1133 = vmatpush1.msra.mxu0 %v486
    %1134 = vmatprep.subr.mxu0 %v491
    %1135 = vmatpush1.msra.mxu0 %v490
    %1136 = vmatprep.subr.mxu0 %v495
    %1137 = vmatpush1.msra.mxu0 %v494
    %1138 = vmatprep.subr.mxu0 %v499
    %1139 = vmatpush1.msra.mxu0 %v498
    %1140 = vmatprep.subr.mxu0 %v503
    %1141 = vmatpush1.msra.mxu0 %v502
    %1142 = vmatprep.subr.mxu0 %v507
    %1143 = vmatpush1.msra.mxu0 %v506
    %1144 = vmatprep.subr.mxu0 0.0
    %1145 = vmatpush1.msra.mxu0 0.0
    %1146 = vmatprep.subr.mxu0 0.0
    %1147 = vmatpush1.msra.mxu0 0.0
    %1148 = vmatprep.subr.mxu0 0.0
    %1149 = vmatpush1.msra.mxu0 0.0
    %1150 = vmatprep.subr.mxu0 0.0
    %1151 = vmatpush1.msra.mxu0 0.0
    %1152 = vmatprep.subr.mxu0 0.0
    %1153 = vmatpush1.msra.mxu0 0.0
    %1154 = vmatprep.subr.mxu0 0.0
    %1155 = vmatpush1.msra.mxu0 0.0
    %1156 = vmatprep.subr.mxu0 0.0
    %1157 = vmatpush1.msra.mxu0 0.0
    %1158 = vmatprep.subr.mxu0 0.0
    %1159 = vmatpush1.msra.mxu0 0.0
    %1160 = vmatprep.subr.mxu0 0.0
    %1161 = vmatpush1.msra.mxu0 0.0
    %1162 = vmatprep.subr.mxu0 0.0
    %1163 = vmatpush1.msra.mxu0 0.0
    %1164 = vmatprep.subr.mxu0 0.0
    %1165 = vmatpush1.msra.mxu0 0.0
    %1166 = vmatprep.subr.mxu0 0.0
    %1167 = vmatpush1.msra.mxu0 0.0
    %1168 = vmatprep.subr.mxu0 0.0
    %1169 = vmatpush1.msra.mxu0 0.0
    %1170 = vmatprep.subr.mxu0 0.0
    %1171 = vmatpush1.msra.mxu0 0.0
    %1172 = vmatprep.subr.mxu0 0.0
    %1173 = vmatpush1.msra.mxu0 0.0
    %1174 = vmatprep.subr.mxu0 0.0
    %1175 = vmatpush1.msra.mxu0 0.0
    %1176 = vmatprep.mubr.f32.mxu0 0.0
    %1177 = vmatmul.mubr.f32.gmra.mrb[0].mxu0 %v1034
    %v1178 = vpop.f32.mrb[0].mxu0
    %v1179 = vadd.f32 0.0, %v1178
    %v1180 = vpop.f32.mrb[0].mxu0
    %v1181 = vadd.f32 0.0, %v1180
    %1182 = vdwg.mxu0
    %v1183 = vadd.f32 %v1037, %v1108
    %v1184 = vadd.f32 %v1038, %v1110
    %v1185 = vadd.f32 %v1039, %v1179
    %v1186 = vadd.f32 %v1040, %v1181
    %v1187 = vxor.u32 %v1183, 2147483648
    %v1188 = vmul.f32 %v1187, 1.442695
    %v1189 = vpow.pop %v1188
    %v1190 = vadd.f32 %v1189, 1.0
    %v1191 = vrcp.pop %v1190
    %v1192 = vmul.f32 1.0, %v1191
    %v1193 = vxor.u32 %v1184, 2147483648
    %v1194 = vmul.f32 %v1193, 1.442695
    %v1195 = vpow.pop %v1194
    %v1196 = vadd.f32 %v1195, 1.0
    %v1197 = vrcp.pop %v1196
    %v1198 = vmul.f32 1.0, %v1197
    %v1199 = vtanh.pop %v1185
    %v1200 = vxor.u32 %v1186, 2147483648
    %v1201 = vmul.f32 %v1200, 1.442695
    %v1202 = vpow.pop %v1201
    %v1203 = vadd.f32 %v1202, 1.0
    %v1204 = vrcp.pop %v1203
    %v1205 = vmul.f32 1.0, %v1204
    %v1206 = vmul.f32 %v1198, %v1032
    %v1207 = vmul.f32 %v1192, %v1199
    %v1208 = vadd.f32 %v1206, %v1207
    %v1209 = vtanh.pop %v1208
    %v1210 = vmul.f32 %v1205, %v1209
    %s1211 = scalar_lea.vmem [#allocation12], 24
    %1212 = vst [vmem:[%s1211] sm:$0xff] %v1210
    %v1213 = vld [vmem:[#allocation2 + $0x80] sm:$0xff]
    %v1214 = vld [vmem:[#allocation2 + $0x88] sm:$0xff]
    %v1215 = vld [vmem:[#allocation2 + $0x90] sm:$0xff]
    %v1216 = vld [vmem:[#allocation2 + $0x98] sm:$0xff]
    %1217 = vmatprep.subr.mxu0 %v445
    %1218 = vmatpush1.msra.mxu0 %v444
    %1219 = vmatprep.subr.mxu0 %v449
    %1220 = vmatpush1.msra.mxu0 %v448
    %1221 = vmatprep.subr.mxu0 %v453
    %1222 = vmatpush1.msra.mxu0 %v452
    %1223 = vmatprep.subr.mxu0 %v457
    %1224 = vmatpush1.msra.mxu0 %v456
    %1225 = vmatprep.subr.mxu0 %v461
    %1226 = vmatpush1.msra.mxu0 %v460
    %1227 = vmatprep.subr.mxu0 %v465
    %1228 = vmatpush1.msra.mxu0 %v464
    %1229 = vmatprep.subr.mxu0 %v469
    %1230 = vmatpush1.msra.mxu0 %v468
    %1231 = vmatprep.subr.mxu0 %v473
    %1232 = vmatpush1.msra.mxu0 %v472
    %1233 = vmatprep.subr.mxu0 %v477
    %1234 = vmatpush1.msra.mxu0 %v476
    %1235 = vmatprep.subr.mxu0 %v481
    %1236 = vmatpush1.msra.mxu0 %v480
    %1237 = vmatprep.subr.mxu0 %v485
    %1238 = vmatpush1.msra.mxu0 %v484
    %1239 = vmatprep.subr.mxu0 %v489
    %1240 = vmatpush1.msra.mxu0 %v488
    %1241 = vmatprep.subr.mxu0 %v493
    %1242 = vmatpush1.msra.mxu0 %v492
    %1243 = vmatprep.subr.mxu0 %v497
    %1244 = vmatpush1.msra.mxu0 %v496
    %1245 = vmatprep.subr.mxu0 %v501
    %1246 = vmatpush1.msra.mxu0 %v500
    %1247 = vmatprep.subr.mxu0 %v505
    %1248 = vmatpush1.msra.mxu0 %v504
    %1249 = vmatprep.subr.mxu0 0.0
    %1250 = vmatpush1.msra.mxu0 0.0
    %1251 = vmatprep.subr.mxu0 0.0
    %1252 = vmatpush1.msra.mxu0 0.0
    %1253 = vmatprep.subr.mxu0 0.0
    %1254 = vmatpush1.msra.mxu0 0.0
    %1255 = vmatprep.subr.mxu0 0.0
    %1256 = vmatpush1.msra.mxu0 0.0
    %1257 = vmatprep.subr.mxu0 0.0
    %1258 = vmatpush1.msra.mxu0 0.0
    %1259 = vmatprep.subr.mxu0 0.0
    %1260 = vmatpush1.msra.mxu0 0.0
    %1261 = vmatprep.subr.mxu0 0.0
    %1262 = vmatpush1.msra.mxu0 0.0
    %1263 = vmatprep.subr.mxu0 0.0
    %1264 = vmatpush1.msra.mxu0 0.0
    %1265 = vmatprep.subr.mxu0 0.0
    %1266 = vmatpush1.msra.mxu0 0.0
    %1267 = vmatprep.subr.mxu0 0.0
    %1268 = vmatpush1.msra.mxu0 0.0
    %1269 = vmatprep.subr.mxu0 0.0
    %1270 = vmatpush1.msra.mxu0 0.0
    %1271 = vmatprep.subr.mxu0 0.0
    %1272 = vmatpush1.msra.mxu0 0.0
    %1273 = vmatprep.subr.mxu0 0.0
    %1274 = vmatpush1.msra.mxu0 0.0
    %1275 = vmatprep.subr.mxu0 0.0
    %1276 = vmatpush1.msra.mxu0 0.0
    %1277 = vmatprep.subr.mxu0 0.0
    %1278 = vmatpush1.msra.mxu0 0.0
    %1279 = vmatprep.subr.mxu0 0.0
    %1280 = vmatpush1.msra.mxu0 0.0
    %1281 = vmatprep.mubr.f32.mxu0 0.0
    %1282 = vmatmul.mubr.f32.gmra.mrb[0].mxu0 %v1210
    %v1283 = vpop.f32.mrb[0].mxu0
    %v1284 = vadd.f32 0.0, %v1283
    %v1285 = vpop.f32.mrb[0].mxu0
    %v1286 = vadd.f32 0.0, %v1285
    %1287 = vdwg.mxu0
    %1288 = vmatprep.subr.mxu0 %v447
    %1289 = vmatpush1.msra.mxu0 %v446
    %1290 = vmatprep.subr.mxu0 %v451
    %1291 = vmatpush1.msra.mxu0 %v450
    %1292 = vmatprep.subr.mxu0 %v455
    %1293 = vmatpush1.msra.mxu0 %v454
    %1294 = vmatprep.subr.mxu0 %v459
    %1295 = vmatpush1.msra.mxu0 %v458
    %1296 = vmatprep.subr.mxu0 %v463
    %1297 = vmatpush1.msra.mxu0 %v462
    %1298 = vmatprep.subr.mxu0 %v467
    %1299 = vmatpush1.msra.mxu0 %v466
    %1300 = vmatprep.subr.mxu0 %v471
    %1301 = vmatpush1.msra.mxu0 %v470
    %1302 = vmatprep.subr.mxu0 %v475
    %1303 = vmatpush1.msra.mxu0 %v474
    %1304 = vmatprep.subr.mxu0 %v479
    %1305 = vmatpush1.msra.mxu0 %v478
    %1306 = vmatprep.subr.mxu0 %v483
    %1307 = vmatpush1.msra.mxu0 %v482
    %1308 = vmatprep.subr.mxu0 %v487
    %1309 = vmatpush1.msra.mxu0 %v486
    %1310 = vmatprep.subr.mxu0 %v491
    %1311 = vmatpush1.msra.mxu0 %v490
    %1312 = vmatprep.subr.mxu0 %v495
    %1313 = vmatpush1.msra.mxu0 %v494
    %1314 = vmatprep.subr.mxu0 %v499
    %1315 = vmatpush1.msra.mxu0 %v498
    %1316 = vmatprep.subr.mxu0 %v503
    %1317 = vmatpush1.msra.mxu0 %v502
    %1318 = vmatprep.subr.mxu0 %v507
    %1319 = vmatpush1.msra.mxu0 %v506
    %1320 = vmatprep.subr.mxu0 0.0
    %1321 = vmatpush1.msra.mxu0 0.0
    %1322 = vmatprep.subr.mxu0 0.0
    %1323 = vmatpush1.msra.mxu0 0.0
    %1324 = vmatprep.subr.mxu0 0.0
    %1325 = vmatpush1.msra.mxu0 0.0
    %1326 = vmatprep.subr.mxu0 0.0
    %1327 = vmatpush1.msra.mxu0 0.0
    %1328 = vmatprep.subr.mxu0 0.0
    %1329 = vmatpush1.msra.mxu0 0.0
    %1330 = vmatprep.subr.mxu0 0.0
    %1331 = vmatpush1.msra.mxu0 0.0
    %1332 = vmatprep.subr.mxu0 0.0
    %1333 = vmatpush1.msra.mxu0 0.0
    %1334 = vmatprep.subr.mxu0 0.0
    %1335 = vmatpush1.msra.mxu0 0.0
    %1336 = vmatprep.subr.mxu0 0.0
    %1337 = vmatpush1.msra.mxu0 0.0
    %1338 = vmatprep.subr.mxu0 0.0
    %1339 = vmatpush1.msra.mxu0 0.0
    %1340 = vmatprep.subr.mxu0 0.0
    %1341 = vmatpush1.msra.mxu0 0.0
    %1342 = vmatprep.subr.mxu0 0.0
    %1343 = vmatpush1.msra.mxu0 0.0
    %1344 = vmatprep.subr.mxu0 0.0
    %1345 = vmatpush1.msra.mxu0 0.0
    %1346 = vmatprep.subr.mxu0 0.0
    %1347 = vmatpush1.msra.mxu0 0.0
    %1348 = vmatprep.subr.mxu0 0.0
    %1349 = vmatpush1.msra.mxu0 0.0
    %1350 = vmatprep.subr.mxu0 0.0
    %1351 = vmatpush1.msra.mxu0 0.0
    %1352 = vmatprep.mubr.f32.mxu0 0.0
    %1353 = vmatmul.mubr.f32.gmra.mrb[0].mxu0 %v1210
    %v1354 = vpop.f32.mrb[0].mxu0
    %v1355 = vadd.f32 0.0, %v1354
    %v1356 = vpop.f32.mrb[0].mxu0
    %v1357 = vadd.f32 0.0, %v1356
    %1358 = vdwg.mxu0
    %v1359 = vadd.f32 %v1213, %v1284
    %v1360 = vadd.f32 %v1214, %v1286
    %v1361 = vadd.f32 %v1215, %v1355
    %v1362 = vadd.f32 %v1216, %v1357
    %v1363 = vxor.u32 %v1359, 2147483648
    %v1364 = vmul.f32 %v1363, 1.442695
    %v1365 = vpow.pop %v1364
    %v1366 = vadd.f32 %v1365, 1.0
    %v1367 = vrcp.pop %v1366
    %v1368 = vmul.f32 1.0, %v1367
    %v1369 = vxor.u32 %v1360, 2147483648
    %v1370 = vmul.f32 %v1369, 1.442695
    %v1371 = vpow.pop %v1370
    %v1372 = vadd.f32 %v1371, 1.0
    %v1373 = vrcp.pop %v1372
    %v1374 = vmul.f32 1.0, %v1373
    %v1375 = vtanh.pop %v1361
    %v1376 = vxor.u32 %v1362, 2147483648
    %v1377 = vmul.f32 %v1376, 1.442695
    %v1378 = vpow.pop %v1377
    %v1379 = vadd.f32 %v1378, 1.0
    %v1380 = vrcp.pop %v1379
    %v1381 = vmul.f32 1.0, %v1380
    %v1382 = vmul.f32 %v1374, %v1208
    %v1383 = vmul.f32 %v1368, %v1375
    %v1384 = vadd.f32 %v1382, %v1383
    %v1385 = vtanh.pop %v1384
    %v1386 = vmul.f32 %v1381, %v1385
    %s1387 = scalar_lea.vmem [#allocation12], 32
    %1388 = vst [vmem:[%s1387] sm:$0xff] %v1386
    %v1389 = vld [vmem:[#allocation2 + $0xa0] sm:$0xff]
    %v1390 = vld [vmem:[#allocation2 + $0xa8] sm:$0xff]
    %v1391 = vld [vmem:[#allocation2 + $0xb0] sm:$0xff]
    %v1392 = vld [vmem:[#allocation2 + $0xb8] sm:$0xff]
    %1393 = vmatprep.subr.mxu0 %v445
    %1394 = vmatpush1.msra.mxu0 %v444
    %1395 = vmatprep.subr.mxu0 %v449
    %1396 = vmatpush1.msra.mxu0 %v448
    %1397 = vmatprep.subr.mxu0 %v453
    %1398 = vmatpush1.msra.mxu0 %v452
    %1399 = vmatprep.subr.mxu0 %v457
    %1400 = vmatpush1.msra.mxu0 %v456
    %1401 = vmatprep.subr.mxu0 %v461
    %1402 = vmatpush1.msra.mxu0 %v460
    %1403 = vmatprep.subr.mxu0 %v465
    %1404 = vmatpush1.msra.mxu0 %v464
    %1405 = vmatprep.subr.mxu0 %v469
    %1406 = vmatpush1.msra.mxu0 %v468
    %1407 = vmatprep.subr.mxu0 %v473
    %1408 = vmatpush1.msra.mxu0 %v472
    %1409 = vmatprep.subr.mxu0 %v477
    %1410 = vmatpush1.msra.mxu0 %v476
    %1411 = vmatprep.subr.mxu0 %v481
    %1412 = vmatpush1.msra.mxu0 %v480
    %1413 = vmatprep.subr.mxu0 %v485
    %1414 = vmatpush1.msra.mxu0 %v484
    %1415 = vmatprep.subr.mxu0 %v489
    %1416 = vmatpush1.msra.mxu0 %v488
    %1417 = vmatprep.subr.mxu0 %v493
    %1418 = vmatpush1.msra.mxu0 %v492
    %1419 = vmatprep.subr.mxu0 %v497
    %1420 = vmatpush1.msra.mxu0 %v496
    %1421 = vmatprep.subr.mxu0 %v501
    %1422 = vmatpush1.msra.mxu0 %v500
    %1423 = vmatprep.subr.mxu0 %v505
    %1424 = vmatpush1.msra.mxu0 %v504
    %1425 = vmatprep.subr.mxu0 0.0
    %1426 = vmatpush1.msra.mxu0 0.0
    %1427 = vmatprep.subr.mxu0 0.0
    %1428 = vmatpush1.msra.mxu0 0.0
    %1429 = vmatprep.subr.mxu0 0.0
    %1430 = vmatpush1.msra.mxu0 0.0
    %1431 = vmatprep.subr.mxu0 0.0
    %1432 = vmatpush1.msra.mxu0 0.0
    %1433 = vmatprep.subr.mxu0 0.0
    %1434 = vmatpush1.msra.mxu0 0.0
    %1435 = vmatprep.subr.mxu0 0.0
    %1436 = vmatpush1.msra.mxu0 0.0
    %1437 = vmatprep.subr.mxu0 0.0
    %1438 = vmatpush1.msra.mxu0 0.0
    %1439 = vmatprep.subr.mxu0 0.0
    %1440 = vmatpush1.msra.mxu0 0.0
    %1441 = vmatprep.subr.mxu0 0.0
    %1442 = vmatpush1.msra.mxu0 0.0
    %1443 = vmatprep.subr.mxu0 0.0
    %1444 = vmatpush1.msra.mxu0 0.0
    %1445 = vmatprep.subr.mxu0 0.0
    %1446 = vmatpush1.msra.mxu0 0.0
    %1447 = vmatprep.subr.mxu0 0.0
    %1448 = vmatpush1.msra.mxu0 0.0
    %1449 = vmatprep.subr.mxu0 0.0
    %1450 = vmatpush1.msra.mxu0 0.0
    %1451 = vmatprep.subr.mxu0 0.0
    %1452 = vmatpush1.msra.mxu0 0.0
    %1453 = vmatprep.subr.mxu0 0.0
    %1454 = vmatpush1.msra.mxu0 0.0
    %1455 = vmatprep.subr.mxu0 0.0
    %1456 = vmatpush1.msra.mxu0 0.0
    %1457 = vmatprep.mubr.f32.mxu0 0.0
    %1458 = vmatmul.mubr.f32.gmra.mrb[0].mxu0 %v1386
    %v1459 = vpop.f32.mrb[0].mxu0
    %v1460 = vadd.f32 0.0, %v1459
    %v1461 = vpop.f32.mrb[0].mxu0
    %v1462 = vadd.f32 0.0, %v1461
    %1463 = vdwg.mxu0
    %1464 = vmatprep.subr.mxu0 %v447
    %1465 = vmatpush1.msra.mxu0 %v446
    %1466 = vmatprep.subr.mxu0 %v451
    %1467 = vmatpush1.msra.mxu0 %v450
    %1468 = vmatprep.subr.mxu0 %v455
    %1469 = vmatpush1.msra.mxu0 %v454
    %1470 = vmatprep.subr.mxu0 %v459
    %1471 = vmatpush1.msra.mxu0 %v458
    %1472 = vmatprep.subr.mxu0 %v463
    %1473 = vmatpush1.msra.mxu0 %v462
    %1474 = vmatprep.subr.mxu0 %v467
    %1475 = vmatpush1.msra.mxu0 %v466
    %1476 = vmatprep.subr.mxu0 %v471
    %1477 = vmatpush1.msra.mxu0 %v470
    %1478 = vmatprep.subr.mxu0 %v475
    %1479 = vmatpush1.msra.mxu0 %v474
    %1480 = vmatprep.subr.mxu0 %v479
    %1481 = vmatpush1.msra.mxu0 %v478
    %1482 = vmatprep.subr.mxu0 %v483
    %1483 = vmatpush1.msra.mxu0 %v482
    %1484 = vmatprep.subr.mxu0 %v487
    %1485 = vmatpush1.msra.mxu0 %v486
    %1486 = vmatprep.subr.mxu0 %v491
    %1487 = vmatpush1.msra.mxu0 %v490
    %1488 = vmatprep.subr.mxu0 %v495
    %1489 = vmatpush1.msra.mxu0 %v494
    %1490 = vmatprep.subr.mxu0 %v499
    %1491 = vmatpush1.msra.mxu0 %v498
    %1492 = vmatprep.subr.mxu0 %v503
    %1493 = vmatpush1.msra.mxu0 %v502
    %1494 = vmatprep.subr.mxu0 %v507
    %1495 = vmatpush1.msra.mxu0 %v506
    %1496 = vmatprep.subr.mxu0 0.0
    %1497 = vmatpush1.msra.mxu0 0.0
    %1498 = vmatprep.subr.mxu0 0.0
    %1499 = vmatpush1.msra.mxu0 0.0
    %1500 = vmatprep.subr.mxu0 0.0
    %1501 = vmatpush1.msra.mxu0 0.0
    %1502 = vmatprep.subr.mxu0 0.0
    %1503 = vmatpush1.msra.mxu0 0.0
    %1504 = vmatprep.subr.mxu0 0.0
    %1505 = vmatpush1.msra.mxu0 0.0
    %1506 = vmatprep.subr.mxu0 0.0
    %1507 = vmatpush1.msra.mxu0 0.0
    %1508 = vmatprep.subr.mxu0 0.0
    %1509 = vmatpush1.msra.mxu0 0.0
    %1510 = vmatprep.subr.mxu0 0.0
    %1511 = vmatpush1.msra.mxu0 0.0
    %1512 = vmatprep.subr.mxu0 0.0
    %1513 = vmatpush1.msra.mxu0 0.0
    %1514 = vmatprep.subr.mxu0 0.0
    %1515 = vmatpush1.msra.mxu0 0.0
    %1516 = vmatprep.subr.mxu0 0.0
    %1517 = vmatpush1.msra.mxu0 0.0
    %1518 = vmatprep.subr.mxu0 0.0
    %1519 = vmatpush1.msra.mxu0 0.0
    %1520 = vmatprep.subr.mxu0 0.0
    %1521 = vmatpush1.msra.mxu0 0.0
    %1522 = vmatprep.subr.mxu0 0.0
    %1523 = vmatpush1.msra.mxu0 0.0
    %1524 = vmatprep.subr.mxu0 0.0
    %1525 = vmatpush1.msra.mxu0 0.0
    %1526 = vmatprep.subr.mxu0 0.0
    %1527 = vmatpush1.msra.mxu0 0.0
    %1528 = vmatprep.mubr.f32.mxu0 0.0
    %1529 = vmatmul.mubr.f32.gmra.mrb[0].mxu0 %v1386
    %v1530 = vpop.f32.mrb[0].mxu0
    %v1531 = vadd.f32 0.0, %v1530
    %v1532 = vpop.f32.mrb[0].mxu0
    %v1533 = vadd.f32 0.0, %v1532
    %1534 = vdwg.mxu0
    %v1535 = vadd.f32 %v1389, %v1460
    %v1536 = vadd.f32 %v1390, %v1462
    %v1537 = vadd.f32 %v1391, %v1531
    %v1538 = vadd.f32 %v1392, %v1533
    %v1539 = vxor.u32 %v1535, 2147483648
    %v1540 = vmul.f32 %v1539, 1.442695
    %v1541 = vpow.pop %v1540
    %v1542 = vadd.f32 %v1541, 1.0
    %v1543 = vrcp.pop %v1542
    %v1544 = vmul.f32 1.0, %v1543
    %v1545 = vxor.u32 %v1536, 2147483648
    %v1546 = vmul.f32 %v1545, 1.442695
    %v1547 = vpow.pop %v1546
    %v1548 = vadd.f32 %v1547, 1.0
    %v1549 = vrcp.pop %v1548
    %v1550 = vmul.f32 1.0, %v1549
    %v1551 = vtanh.pop %v1537
    %v1552 = vxor.u32 %v1538, 2147483648
    %v1553 = vmul.f32 %v1552, 1.442695
    %v1554 = vpow.pop %v1553
    %v1555 = vadd.f32 %v1554, 1.0
    %v1556 = vrcp.pop %v1555
    %v1557 = vmul.f32 1.0, %v1556
    %v1558 = vmul.f32 %v1550, %v1384
    %v1559 = vmul.f32 %v1544, %v1551
    %v1560 = vadd.f32 %v1558, %v1559
    %v1561 = vtanh.pop %v1560
    %v1562 = vmul.f32 %v1557, %v1561
    %s1563 = scalar_lea.vmem [#allocation12], 40
    %1564 = vst [vmem:[%s1563] sm:$0xff] %v1562
    %v1565 = vld [vmem:[#allocation2 + $0xc0] sm:$0xff]
    %v1566 = vld [vmem:[#allocation2 + $0xc8] sm:$0xff]
    %v1567 = vld [vmem:[#allocation2 + $0xd0] sm:$0xff]
    %v1568 = vld [vmem:[#allocation2 + $0xd8] sm:$0xff]
    %1569 = vmatprep.subr.mxu0 %v445
    %1570 = vmatpush1.msra.mxu0 %v444
    %1571 = vmatprep.subr.mxu0 %v449
    %1572 = vmatpush1.msra.mxu0 %v448
    %1573 = vmatprep.subr.mxu0 %v453
    %1574 = vmatpush1.msra.mxu0 %v452
    %1575 = vmatprep.subr.mxu0 %v457
    %1576 = vmatpush1.msra.mxu0 %v456
    %1577 = vmatprep.subr.mxu0 %v461
    %1578 = vmatpush1.msra.mxu0 %v460
    %1579 = vmatprep.subr.mxu0 %v465
    %1580 = vmatpush1.msra.mxu0 %v464
    %1581 = vmatprep.subr.mxu0 %v469
    %1582 = vmatpush1.msra.mxu0 %v468
    %1583 = vmatprep.subr.mxu0 %v473
    %1584 = vmatpush1.msra.mxu0 %v472
    %1585 = vmatprep.subr.mxu0 %v477
    %1586 = vmatpush1.msra.mxu0 %v476
    %1587 = vmatprep.subr.mxu0 %v481
    %1588 = vmatpush1.msra.mxu0 %v480
    %1589 = vmatprep.subr.mxu0 %v485
    %1590 = vmatpush1.msra.mxu0 %v484
    %1591 = vmatprep.subr.mxu0 %v489
    %1592 = vmatpush1.msra.mxu0 %v488
    %1593 = vmatprep.subr.mxu0 %v493
    %1594 = vmatpush1.msra.mxu0 %v492
    %1595 = vmatprep.subr.mxu0 %v497
    %1596 = vmatpush1.msra.mxu0 %v496
    %1597 = vmatprep.subr.mxu0 %v501
    %1598 = vmatpush1.msra.mxu0 %v500
    %1599 = vmatprep.subr.mxu0 %v505
    %1600 = vmatpush1.msra.mxu0 %v504
    %1601 = vmatprep.subr.mxu0 0.0
    %1602 = vmatpush1.msra.mxu0 0.0
    %1603 = vmatprep.subr.mxu0 0.0
    %1604 = vmatpush1.msra.mxu0 0.0
    %1605 = vmatprep.subr.mxu0 0.0
    %1606 = vmatpush1.msra.mxu0 0.0
    %1607 = vmatprep.subr.mxu0 0.0
    %1608 = vmatpush1.msra.mxu0 0.0
    %1609 = vmatprep.subr.mxu0 0.0
    %1610 = vmatpush1.msra.mxu0 0.0
    %1611 = vmatprep.subr.mxu0 0.0
    %1612 = vmatpush1.msra.mxu0 0.0
    %1613 = vmatprep.subr.mxu0 0.0
    %1614 = vmatpush1.msra.mxu0 0.0
    %1615 = vmatprep.subr.mxu0 0.0
    %1616 = vmatpush1.msra.mxu0 0.0
    %1617 = vmatprep.subr.mxu0 0.0
    %1618 = vmatpush1.msra.mxu0 0.0
    %1619 = vmatprep.subr.mxu0 0.0
    %1620 = vmatpush1.msra.mxu0 0.0
    %1621 = vmatprep.subr.mxu0 0.0
    %1622 = vmatpush1.msra.mxu0 0.0
    %1623 = vmatprep.subr.mxu0 0.0
    %1624 = vmatpush1.msra.mxu0 0.0
    %1625 = vmatprep.subr.mxu0 0.0
    %1626 = vmatpush1.msra.mxu0 0.0
    %1627 = vmatprep.subr.mxu0 0.0
    %1628 = vmatpush1.msra.mxu0 0.0
    %1629 = vmatprep.subr.mxu0 0.0
    %1630 = vmatpush1.msra.mxu0 0.0
    %1631 = vmatprep.subr.mxu0 0.0
    %1632 = vmatpush1.msra.mxu0 0.0
    %1633 = vmatprep.mubr.f32.mxu0 0.0
    %1634 = vmatmul.mubr.f32.gmra.mrb[0].mxu0 %v1562
    %v1635 = vpop.f32.mrb[0].mxu0
    %v1636 = vadd.f32 0.0, %v1635
    %v1637 = vpop.f32.mrb[0].mxu0
    %v1638 = vadd.f32 0.0, %v1637
    %1639 = vdwg.mxu0
    %1640 = vmatprep.subr.mxu0 %v447
    %1641 = vmatpush1.msra.mxu0 %v446
    %1642 = vmatprep.subr.mxu0 %v451
    %1643 = vmatpush1.msra.mxu0 %v450
    %1644 = vmatprep.subr.mxu0 %v455
    %1645 = vmatpush1.msra.mxu0 %v454
    %1646 = vmatprep.subr.mxu0 %v459
    %1647 = vmatpush1.msra.mxu0 %v458
    %1648 = vmatprep.subr.mxu0 %v463
    %1649 = vmatpush1.msra.mxu0 %v462
    %1650 = vmatprep.subr.mxu0 %v467
    %1651 = vmatpush1.msra.mxu0 %v466
    %1652 = vmatprep.subr.mxu0 %v471
    %1653 = vmatpush1.msra.mxu0 %v470
    %1654 = vmatprep.subr.mxu0 %v475
    %1655 = vmatpush1.msra.mxu0 %v474
    %1656 = vmatprep.subr.mxu0 %v479
    %1657 = vmatpush1.msra.mxu0 %v478
    %1658 = vmatprep.subr.mxu0 %v483
    %1659 = vmatpush1.msra.mxu0 %v482
    %1660 = vmatprep.subr.mxu0 %v487
    %1661 = vmatpush1.msra.mxu0 %v486
    %1662 = vmatprep.subr.mxu0 %v491
    %1663 = vmatpush1.msra.mxu0 %v490
    %1664 = vmatprep.subr.mxu0 %v495
    %1665 = vmatpush1.msra.mxu0 %v494
    %1666 = vmatprep.subr.mxu0 %v499
    %1667 = vmatpush1.msra.mxu0 %v498
    %1668 = vmatprep.subr.mxu0 %v503
    %1669 = vmatpush1.msra.mxu0 %v502
    %1670 = vmatprep.subr.mxu0 %v507
    %1671 = vmatpush1.msra.mxu0 %v506
    %1672 = vmatprep.subr.mxu0 0.0
    %1673 = vmatpush1.msra.mxu0 0.0
    %1674 = vmatprep.subr.mxu0 0.0
    %1675 = vmatpush1.msra.mxu0 0.0
    %1676 = vmatprep.subr.mxu0 0.0
    %1677 = vmatpush1.msra.mxu0 0.0
    %1678 = vmatprep.subr.mxu0 0.0
    %1679 = vmatpush1.msra.mxu0 0.0
    %1680 = vmatprep.subr.mxu0 0.0
    %1681 = vmatpush1.msra.mxu0 0.0
    %1682 = vmatprep.subr.mxu0 0.0
    %1683 = vmatpush1.msra.mxu0 0.0
    %1684 = vmatprep.subr.mxu0 0.0
    %1685 = vmatpush1.msra.mxu0 0.0
    %1686 = vmatprep.subr.mxu0 0.0
    %1687 = vmatpush1.msra.mxu0 0.0
    %1688 = vmatprep.subr.mxu0 0.0
    %1689 = vmatpush1.msra.mxu0 0.0
    %1690 = vmatprep.subr.mxu0 0.0
    %1691 = vmatpush1.msra.mxu0 0.0
    %1692 = vmatprep.subr.mxu0 0.0
    %1693 = vmatpush1.msra.mxu0 0.0
    %1694 = vmatprep.subr.mxu0 0.0
    %1695 = vmatpush1.msra.mxu0 0.0
    %1696 = vmatprep.subr.mxu0 0.0
    %1697 = vmatpush1.msra.mxu0 0.0
    %1698 = vmatprep.subr.mxu0 0.0
    %1699 = vmatpush1.msra.mxu0 0.0
    %1700 = vmatprep.subr.mxu0 0.0
    %1701 = vmatpush1.msra.mxu0 0.0
    %1702 = vmatprep.subr.mxu0 0.0
    %1703 = vmatpush1.msra.mxu0 0.0
    %1704 = vmatprep.mubr.f32.mxu0 0.0
    %1705 = vmatmul.mubr.f32.gmra.mrb[0].mxu0 %v1562
    %v1706 = vpop.f32.mrb[0].mxu0
    %v1707 = vadd.f32 0.0, %v1706
    %v1708 = vpop.f32.mrb[0].mxu0
    %v1709 = vadd.f32 0.0, %v1708
    %1710 = vdwg.mxu0
    %v1711 = vadd.f32 %v1565, %v1636
    %v1712 = vadd.f32 %v1566, %v1638
    %v1713 = vadd.f32 %v1567, %v1707
    %v1714 = vadd.f32 %v1568, %v1709
    %v1715 = vxor.u32 %v1711, 2147483648
    %v1716 = vmul.f32 %v1715, 1.442695
    %v1717 = vpow.pop %v1716
    %v1718 = vadd.f32 %v1717, 1.0
    %v1719 = vrcp.pop %v1718
    %v1720 = vmul.f32 1.0, %v1719
    %v1721 = vxor.u32 %v1712, 2147483648
    %v1722 = vmul.f32 %v1721, 1.442695
    %v1723 = vpow.pop %v1722
    %v1724 = vadd.f32 %v1723, 1.0
    %v1725 = vrcp.pop %v1724
    %v1726 = vmul.f32 1.0, %v1725
    %v1727 = vtanh.pop %v1713
    %v1728 = vxor.u32 %v1714, 2147483648
    %v1729 = vmul.f32 %v1728, 1.442695
    %v1730 = vpow.pop %v1729
    %v1731 = vadd.f32 %v1730, 1.0
    %v1732 = vrcp.pop %v1731
    %v1733 = vmul.f32 1.0, %v1732
    %v1734 = vmul.f32 %v1726, %v1560
    %v1735 = vmul.f32 %v1720, %v1727
    %v1736 = vadd.f32 %v1734, %v1735
    %v1737 = vtanh.pop %v1736
    %v1738 = vmul.f32 %v1733, %v1737
    %s1739 = scalar_lea.vmem [#allocation12], 48
    %1740 = vst [vmem:[%s1739] sm:$0xff] %v1738
    %v1741 = vld [vmem:[#allocation2 + $0xe0] sm:$0xff]
    %v1742 = vld [vmem:[#allocation2 + $0xe8] sm:$0xff]
    %v1743 = vld [vmem:[#allocation2 + $0xf0] sm:$0xff]
    %v1744 = vld [vmem:[#allocation2 + $0xf8] sm:$0xff]
    %1745 = vmatprep.subr.mxu0 %v445
    %1746 = vmatpush1.msra.mxu0 %v444
    %1747 = vmatprep.subr.mxu0 %v449
    %1748 = vmatpush1.msra.mxu0 %v448
    %1749 = vmatprep.subr.mxu0 %v453
    %1750 = vmatpush1.msra.mxu0 %v452
    %1751 = vmatprep.subr.mxu0 %v457
    %1752 = vmatpush1.msra.mxu0 %v456
    %1753 = vmatprep.subr.mxu0 %v461
    %1754 = vmatpush1.msra.mxu0 %v460
    %1755 = vmatprep.subr.mxu0 %v465
    %1756 = vmatpush1.msra.mxu0 %v464
    %1757 = vmatprep.subr.mxu0 %v469
    %1758 = vmatpush1.msra.mxu0 %v468
    %1759 = vmatprep.subr.mxu0 %v473
    %1760 = vmatpush1.msra.mxu0 %v472
    %1761 = vmatprep.subr.mxu0 %v477
    %1762 = vmatpush1.msra.mxu0 %v476
    %1763 = vmatprep.subr.mxu0 %v481
    %1764 = vmatpush1.msra.mxu0 %v480
    %1765 = vmatprep.subr.mxu0 %v485
    %1766 = vmatpush1.msra.mxu0 %v484
    %1767 = vmatprep.subr.mxu0 %v489
    %1768 = vmatpush1.msra.mxu0 %v488
    %1769 = vmatprep.subr.mxu0 %v493
    %1770 = vmatpush1.msra.mxu0 %v492
    %1771 = vmatprep.subr.mxu0 %v497
    %1772 = vmatpush1.msra.mxu0 %v496
    %1773 = vmatprep.subr.mxu0 %v501
    %1774 = vmatpush1.msra.mxu0 %v500
    %1775 = vmatprep.subr.mxu0 %v505
    %1776 = vmatpush1.msra.mxu0 %v504
    %1777 = vmatprep.subr.mxu0 0.0
    %1778 = vmatpush1.msra.mxu0 0.0
    %1779 = vmatprep.subr.mxu0 0.0
    %1780 = vmatpush1.msra.mxu0 0.0
    %1781 = vmatprep.subr.mxu0 0.0
    %1782 = vmatpush1.msra.mxu0 0.0
    %1783 = vmatprep.subr.mxu0 0.0
    %1784 = vmatpush1.msra.mxu0 0.0
    %1785 = vmatprep.subr.mxu0 0.0
    %1786 = vmatpush1.msra.mxu0 0.0
    %1787 = vmatprep.subr.mxu0 0.0
    %1788 = vmatpush1.msra.mxu0 0.0
    %1789 = vmatprep.subr.mxu0 0.0
    %1790 = vmatpush1.msra.mxu0 0.0
    %1791 = vmatprep.subr.mxu0 0.0
    %1792 = vmatpush1.msra.mxu0 0.0
    %1793 = vmatprep.subr.mxu0 0.0
    %1794 = vmatpush1.msra.mxu0 0.0
    %1795 = vmatprep.subr.mxu0 0.0
    %1796 = vmatpush1.msra.mxu0 0.0
    %1797 = vmatprep.subr.mxu0 0.0
    %1798 = vmatpush1.msra.mxu0 0.0
    %1799 = vmatprep.subr.mxu0 0.0
    %1800 = vmatpush1.msra.mxu0 0.0
    %1801 = vmatprep.subr.mxu0 0.0
    %1802 = vmatpush1.msra.mxu0 0.0
    %1803 = vmatprep.subr.mxu0 0.0
    %1804 = vmatpush1.msra.mxu0 0.0
    %1805 = vmatprep.subr.mxu0 0.0
    %1806 = vmatpush1.msra.mxu0 0.0
    %1807 = vmatprep.subr.mxu0 0.0
    %1808 = vmatpush1.msra.mxu0 0.0
    %1809 = vmatprep.mubr.f32.mxu0 0.0
    %1810 = vmatmul.mubr.f32.gmra.mrb[0].mxu0 %v1738
    %v1811 = vpop.f32.mrb[0].mxu0
    %v1812 = vadd.f32 0.0, %v1811
    %v1813 = vpop.f32.mrb[0].mxu0
    %v1814 = vadd.f32 0.0, %v1813
    %1815 = vdwg.mxu0
    %1816 = vmatprep.subr.mxu0 %v447
    %1817 = vmatpush1.msra.mxu0 %v446
    %1818 = vmatprep.subr.mxu0 %v451
    %1819 = vmatpush1.msra.mxu0 %v450
    %1820 = vmatprep.subr.mxu0 %v455
    %1821 = vmatpush1.msra.mxu0 %v454
    %1822 = vmatprep.subr.mxu0 %v459
    %1823 = vmatpush1.msra.mxu0 %v458
    %1824 = vmatprep.subr.mxu0 %v463
    %1825 = vmatpush1.msra.mxu0 %v462
    %1826 = vmatprep.subr.mxu0 %v467
    %1827 = vmatpush1.msra.mxu0 %v466
    %1828 = vmatprep.subr.mxu0 %v471
    %1829 = vmatpush1.msra.mxu0 %v470
    %1830 = vmatprep.subr.mxu0 %v475
    %1831 = vmatpush1.msra.mxu0 %v474
    %1832 = vmatprep.subr.mxu0 %v479
    %1833 = vmatpush1.msra.mxu0 %v478
    %1834 = vmatprep.subr.mxu0 %v483
    %1835 = vmatpush1.msra.mxu0 %v482
    %1836 = vmatprep.subr.mxu0 %v487
    %1837 = vmatpush1.msra.mxu0 %v486
    %1838 = vmatprep.subr.mxu0 %v491
    %1839 = vmatpush1.msra.mxu0 %v490
    %1840 = vmatprep.subr.mxu0 %v495
    %1841 = vmatpush1.msra.mxu0 %v494
    %1842 = vmatprep.subr.mxu0 %v499
    %1843 = vmatpush1.msra.mxu0 %v498
    %1844 = vmatprep.subr.mxu0 %v503
    %1845 = vmatpush1.msra.mxu0 %v502
    %1846 = vmatprep.subr.mxu0 %v507
    %1847 = vmatpush1.msra.mxu0 %v506
    %1848 = vmatprep.subr.mxu0 0.0
    %1849 = vmatpush1.msra.mxu0 0.0
    %1850 = vmatprep.subr.mxu0 0.0
    %1851 = vmatpush1.msra.mxu0 0.0
    %1852 = vmatprep.subr.mxu0 0.0
    %1853 = vmatpush1.msra.mxu0 0.0
    %1854 = vmatprep.subr.mxu0 0.0
    %1855 = vmatpush1.msra.mxu0 0.0
    %1856 = vmatprep.subr.mxu0 0.0
    %1857 = vmatpush1.msra.mxu0 0.0
    %1858 = vmatprep.subr.mxu0 0.0
    %1859 = vmatpush1.msra.mxu0 0.0
    %1860 = vmatprep.subr.mxu0 0.0
    %1861 = vmatpush1.msra.mxu0 0.0
    %1862 = vmatprep.subr.mxu0 0.0
    %1863 = vmatpush1.msra.mxu0 0.0
    %1864 = vmatprep.subr.mxu0 0.0
    %1865 = vmatpush1.msra.mxu0 0.0
    %1866 = vmatprep.subr.mxu0 0.0
    %1867 = vmatpush1.msra.mxu0 0.0
    %1868 = vmatprep.subr.mxu0 0.0
    %1869 = vmatpush1.msra.mxu0 0.0
    %1870 = vmatprep.subr.mxu0 0.0
    %1871 = vmatpush1.msra.mxu0 0.0
    %1872 = vmatprep.subr.mxu0 0.0
    %1873 = vmatpush1.msra.mxu0 0.0
    %1874 = vmatprep.subr.mxu0 0.0
    %1875 = vmatpush1.msra.mxu0 0.0
    %1876 = vmatprep.subr.mxu0 0.0
    %1877 = vmatpush1.msra.mxu0 0.0
    %1878 = vmatprep.subr.mxu0 0.0
    %1879 = vmatpush1.msra.mxu0 0.0
    %1880 = vmatprep.mubr.f32.mxu0 0.0
    %1881 = vmatmul.mubr.f32.gmra.mrb[0].mxu0 %v1738
    %v1882 = vpop.f32.mrb[0].mxu0
    %v1883 = vadd.f32 0.0, %v1882
    %v1884 = vpop.f32.mrb[0].mxu0
    %v1885 = vadd.f32 0.0, %v1884
    %1886 = vdwg.mxu0
    %v1887 = vadd.f32 %v1741, %v1812
    %v1888 = vadd.f32 %v1742, %v1814
    %v1889 = vadd.f32 %v1743, %v1883
    %v1890 = vadd.f32 %v1744, %v1885
    %v1891 = vxor.u32 %v1887, 2147483648
    %v1892 = vmul.f32 %v1891, 1.442695
    %v1893 = vpow.pop %v1892
    %v1894 = vadd.f32 %v1893, 1.0
    %v1895 = vrcp.pop %v1894
    %v1896 = vmul.f32 1.0, %v1895
    %v1897 = vxor.u32 %v1888, 2147483648
    %v1898 = vmul.f32 %v1897, 1.442695
    %v1899 = vpow.pop %v1898
    %v1900 = vadd.f32 %v1899, 1.0
    %v1901 = vrcp.pop %v1900
    %v1902 = vmul.f32 1.0, %v1901
    %v1903 = vtanh.pop %v1889
    %v1904 = vxor.u32 %v1890, 2147483648
    %v1905 = vmul.f32 %v1904, 1.442695
    %v1906 = vpow.pop %v1905
    %v1907 = vadd.f32 %v1906, 1.0
    %v1908 = vrcp.pop %v1907
    %v1909 = vmul.f32 1.0, %v1908
    %v1910 = vmul.f32 %v1902, %v1736
    %v1911 = vmul.f32 %v1896, %v1903
    %v1912 = vadd.f32 %v1910, %v1911
    %v1913 = vtanh.pop %v1912
    %v1914 = vmul.f32 %v1909, %v1913
    %s1915 = scalar_lea.vmem [#allocation12], 56
    %1916 = vst [vmem:[%s1915] sm:$0xff] %v1914
    %1917 = vst [vmem:[#allocation13] sm:$0xff] %v1914
    %1918 = vst [vmem:[#allocation15] sm:$0xff] %v1912
    // Predicated region
    $region46: #{tpu_custom_call.1} parent=1 // pred_check
      _
    $region47: #{tpu_custom_call.1} parent=1 // pred_check_branch
      %1920 = sbr.rel (0) target = $region49
    $region48: #{tpu_custom_call.1} parent=1 // pred_region
      %s1922 = ssub.s32 1024, 1024
      %1923 = vsyncadd [#allocation5], %s1922
      %s1924 = sshll.u32 [#allocation12], 4
      %s1925 = int_to_ptr.vmem [resolvable:$true] %s1924
      %1930 = dma.vmem_to_hbm [thread:$0]  %s1925, 1024, %s6, [#allocation5], 128, 128, 8
    $region49: #{tpu_custom_call.1} parent=1 // pred_fallthru
      _
    // Predicated region
    $region50: #{tpu_custom_call.1} parent=1 // pred_check
      _
    $region51: #{tpu_custom_call.1} parent=1 // pred_check_branch
      %1932 = sbr.rel (0) target = $region53
    $region52: #{tpu_custom_call.1} parent=1 // pred_region
      %s1934 = ssub.s32 128, 128
      %1935 = vsyncadd [#allocation14], %s1934
      %s1937 = sshll.u32 [#allocation13], 4
      %s1938 = int_to_ptr.vmem [resolvable:$true] %s1937
      %1940 = dma.vmem_to_hbm [thread:$0]  %s1938, 128, %s7, [#allocation14]
    $region53: #{tpu_custom_call.1} parent=1 // pred_fallthru
      _
    // Predicated region
    $region54: #{tpu_custom_call.1} parent=1 // pred_check
      _
    $region55: #{tpu_custom_call.1} parent=1 // pred_check_branch
      %1942 = sbr.rel (0) target = $region57
    $region56: #{tpu_custom_call.1} parent=1 // pred_region
      %s1944 = ssub.s32 128, 128
      %1945 = vsyncadd [#allocation14], %s1944
      %s1947 = sshll.u32 [#allocation15], 4
      %s1948 = int_to_ptr.vmem [resolvable:$true] %s1947
      %1950 = dma.vmem_to_hbm [thread:$0]  %s1948, 128, %s8, [#allocation14]
    $region57: #{tpu_custom_call.1} parent=1 // pred_fallthru
      _
    // Predicated region
    $region58: #{tpu_custom_call.1} parent=1 // pred_check
      _
    $region59: #{tpu_custom_call.1} parent=1 // pred_check_branch
      %1952 = sbr.rel (0) target = $region61
    $region60: #{tpu_custom_call.1} parent=1 // pred_region
      %1953 = dma.done [#allocation5], 1024
    $region61: #{tpu_custom_call.1} parent=1 // pred_fallthru
      _
    // Predicated region
    $region62: #{tpu_custom_call.1} parent=1 // pred_check
      _
    $region63: #{tpu_custom_call.1} parent=1 // pred_check_branch
      %1955 = sbr.rel (0) target = $region65
    $region64: #{tpu_custom_call.1} parent=1 // pred_region
      %1956 = dma.done [#allocation14], 128
    $region65: #{tpu_custom_call.1} parent=1 // pred_fallthru
      _
    // Predicated region
    $region66: #{tpu_custom_call.1} parent=1 // pred_check
      _
    $region67: #{tpu_custom_call.1} parent=1 // pred_check_branch
      %1958 = sbr.rel (0) target = $region69
    $region68: #{tpu_custom_call.1} parent=1 // pred_region
      %1959 = dma.done [#allocation14], 128
    $region69: #{tpu_custom_call.1} parent=1 // pred_fallthru
      _
    %1960 = vsyncpa [#allocation4], 1
    %1961 = vsyncpa [#allocation7], 1
    %1962 = vsyncpa [#allocation10], 1
    %1963 = vsyncpa [#allocation5], 1
    %1964 = vsyncpa [#allocation14], 1

</llo_original>
